<compile_context>
chip_gen: v5e
topology: v5e:2x2
jax: 0.10.0
libtpu: 0.0.40
codegen_flags: <defaults>
</compile_context>

<pallas_src>
import math
import functools

import jax
import jax.numpy as jnp
import numpy as np
from jax.experimental import pallas as pl
from jax.experimental.pallas import tpu as pltpu


def masked_attention_kernel(x_ref, mrow_ref, mcol_ref, wqkv_ref, wproj_ref,
                            bproj_ref, o_ref, *, num_heads, compute_dtype,
                            approx_reciprocal):
    """One (block_b, N, C) slab of sequences per grid step.

    x_ref     : (Bblk, N, C)  input tokens (compute dtype)
    mrow_ref  : (Bblk, 1, N)  float 0/1 key-validity mask
    mcol_ref  : (Bblk, N, 1)  float 0/1 query-validity mask
    wqkv_ref  : (C, 3C)       fused QKV weight, q columns pre-scaled (compute dtype)
    wproj_ref : (C, C)        transposed projection weight (compute dtype)
    bproj_ref : (1, C)        projection bias (f32)
    o_ref     : (Bblk, N, C)  output
    """
    H = num_heads
    cdt = compute_dtype
    Bblk, N, C = x_ref.shape
    hd = C // H

    # ---- Fused lane-dense QKV projection: (Bblk*N, C) @ (C, 3C) -------------
    x = x_ref[...].reshape(Bblk * N, C)                       # leading-dim merge (free)
    qkv = jnp.dot(x, wqkv_ref[...],
                  preferred_element_type=jnp.float32)         # (Bblk*N, 3C) f32

    # ---- Split heads (single relayout for q, k and v together) --------------
    # Output columns are ordered [q_h0 .. q_h(H-1) | k_h0 .. | v_h0 ..], hd each.
    qkv = qkv.reshape(Bblk, N, 3 * H, hd)
    qkv = jnp.transpose(qkv, (2, 0, 1, 3))                    # (3H, Bblk, N, hd) f32
    q = qkv[:H].reshape(H * Bblk, N, hd).astype(cdt)          # scale folded into q cols
    k = qkv[H:2 * H].reshape(H * Bblk, N, hd).astype(cdt)
    v = qkv[2 * H:].reshape(H * Bblk, N, hd).astype(cdt)

    # ---- Attention scores, batched over (head, batch): f32 accumulation -----
    s = jnp.einsum('gqd,gkd->gqk', q, k,
                   preferred_element_type=jnp.float32)        # (H*Bblk, N, N)
    s = s.reshape(H, Bblk, N, N)

    # Pairwise validity from the two 1-D mask views (broadcast compare, VPU).
    valid = jnp.logical_and(mcol_ref[...] > 0.5, mrow_ref[...] > 0.5)   # (Bblk, N, N)
    s = jnp.where(valid[None], s, -1e30)

    # ---- Softmax over keys (f32) ---------------------------------------------
    s = s - jnp.max(s, axis=-1, keepdims=True)
    p = jnp.exp(s)
    denom = jnp.sum(p, axis=-1, keepdims=True)
    if approx_reciprocal:
        p = p * pl.reciprocal(denom, approx=True)             # EUP slot
    else:
        p = p / denom                                         # exact path (validation)
    p = p.reshape(H * Bblk, N, N).astype(cdt)

    # ---- Weighted values: (H*Bblk, N, hd), f32 accumulation ------------------
    o = jnp.einsum('gqk,gkd->gqd', p, v, preferred_element_type=jnp.float32)

    # ---- Concat heads + single lane-dense output projection ------------------
    o = jnp.transpose(o.reshape(H, Bblk, N, hd), (1, 2, 0, 3))    # (Bblk, N, H, hd)
    o = o.reshape(Bblk * N, C).astype(cdt)
    y = jnp.dot(o, wproj_ref[...], preferred_element_type=jnp.float32)
    y = y + bproj_ref[...]                                        # (Bblk*N, C) f32
    o_ref[...] = y.reshape(Bblk, N, C).astype(o_ref.dtype)


def _pick_block_b(B, N, C, H, *, target_rows=512, max_score_bytes=4 << 20):
    """Largest divisor of B that (a) keeps Bblk*N rows <= target (MXU M-dim well fed),
    (b) keeps the f32 score block small, and (c) leaves >= 2 grid steps when B >= 2
    so the batch axis can shard across v7x's two TensorCores."""
    best = 1
    for bb in range(1, B + 1):
        if B % bb:
            continue
        if bb > 1 and bb * N > target_rows:
            continue
        if bb > 1 and bb * H * N * N * 4 > max_score_bytes:
            continue
        if B >= 2 and B // bb < 2:
            continue
        best = bb
    return best


def _vmem_limit_bytes(block_b, N, C, H, compute_dtype):
    """Derive the VMEM request from the actual working set (plus headroom), instead of
    a blanket number; clamped well below v7x's 64 MiB physical VMEM."""
    f32 = 4
    cs = np.dtype(compute_dtype).itemsize
    rows = block_b * N
    # double-buffered pipelined tiles: x, out, masks
    io = 2 * (rows * C * cs + rows * C * f32 + block_b * 2 * N * f32)
    # resident weights + bias (single-buffered via pl.Buffered(1))
    weights = (3 * C * C + C * C) * cs + C * f32
    # dominant live intermediates (qkv, q/k/v, scores, probs, o, y)
    live = (rows * 3 * C * (f32 + cs)
            + 2 * H * block_b * N * N * f32
            + rows * C * (2 * f32 + cs))
    est = io + weights + live
    return int(min(max(2 * est + (4 << 20), 8 << 20), 32 << 20))


def masked_attention(x, mask, w_qkv, w_proj, b_proj, *, num_heads,
                     compute_dtype=jnp.bfloat16, out_dtype=jnp.float32,
                     approx_reciprocal=None, block_b=None):
    """Wrapper: parameter re-layout + pallas_call.

    x: (B, N, C) f32, mask: (B, N) bool, w_qkv: (3C, C), w_proj: (C, C), b_proj: (C,)
    """
    B, N, C = x.shape
    H = num_heads
    assert C % H == 0
    hd = C // H
    scale = hd ** (-0.5)
    if approx_reciprocal is None:
        approx_reciprocal = compute_dtype != jnp.float32

    # PyTorch Linear: y = x @ W.T.  Kernel weights are pre-transposed; the softmax scale
    # is folded into the q output columns (exact in f32).
    col_scale = jnp.concatenate([jnp.full((C,), scale, jnp.float32),
                                 jnp.ones((2 * C,), jnp.float32)])
    w_qkv_t = (w_qkv.T * col_scale[None, :]).astype(compute_dtype)      # (C, 3C)
    w_proj_t = w_proj.T.astype(compute_dtype)                           # (C, C)
    b_p = b_proj.reshape(1, C).astype(jnp.float32)

    # 1-D mask views only (no (B, N, N) materialization).
    mask_f = mask.astype(jnp.float32)
    mask_row = mask_f.reshape(B, 1, N)
    mask_col = mask_f.reshape(B, N, 1)
    x_c = x.astype(compute_dtype)

    if block_b is None:
        block_b = _pick_block_b(B, N, C, H)
    assert B % block_b == 0
    grid = (B // block_b,)

    kernel = functools.partial(masked_attention_kernel, num_heads=H,
                               compute_dtype=compute_dtype,
                               approx_reciprocal=approx_reciprocal)

    # Weights/bias are grid-invariant (constant index map): single-buffer them.
    resident = pl.Buffered(buffer_count=1)

    grid_spec = pltpu.PrefetchScalarGridSpec(
        num_scalar_prefetch=0,
        grid=grid,
        in_specs=[
            pl.BlockSpec((block_b, N, C), lambda b: (b, 0, 0)),            # x
            pl.BlockSpec((block_b, 1, N), lambda b: (b, 0, 0)),            # key mask
            pl.BlockSpec((block_b, N, 1), lambda b: (b, 0, 0)),            # query mask
            pl.BlockSpec((C, 3 * C), lambda b: (0, 0), pipeline_mode=resident),  # Wqkv
            pl.BlockSpec((C, C), lambda b: (0, 0), pipeline_mode=resident),      # Wproj
            pl.BlockSpec((1, C), lambda b: (0, 0), pipeline_mode=resident),      # bias
        ],
        out_specs=pl.BlockSpec((block_b, N, C), lambda b: (b, 0, 0)),
    )

    return pl.pallas_call(
        kernel,
        out_shape=jax.ShapeDtypeStruct((B, N, C), out_dtype),
        grid_spec=grid_spec,
        compiler_params=pltpu.CompilerParams(
            dimension_semantics=("parallel",),
            vmem_limit_bytes=_vmem_limit_bytes(block_b, N, C, H, compute_dtype)),
    )(x_c, mask_row, mask_col, w_qkv_t, w_proj_t, b_p)


def reference(x, mask, w_qkv, w_proj, b_proj, *, num_heads):
    """Plain-JAX transcription of the PyTorch forward (eval mode, f32)."""
    B, N, C = x.shape
    hd = C // num_heads
    scale = hd ** (-0.5)
    qkv = (x @ w_qkv.T).reshape(B, N, 3, num_heads, hd).transpose(2, 0, 3, 1, 4)
    q, k, v = qkv[0], qkv[1], qkv[2]
    attn = jnp.einsum('bhqd,bhkd->bhqk', q, k) * scale
    m2 = (mask[:, None, :] & mask[:, :, None])[:, None, :, :]
    attn = jnp.where(m2, attn, -jnp.finfo(attn.dtype).max)
    attn = jax.nn.softmax(attn, axis=-1)
    out = jnp.einsum('bhqk,bhkd->bhqd', attn, v).transpose(0, 2, 1, 3).reshape(B, N, C)
    return out @ w_proj.T + b_proj


if __name__ == "__main__":
    # Small shapes consistent with the module: dim must be divisible by num_heads.
    B, N, C = 2, 8, 32
    num_heads = 8

    key = jax.random.PRNGKey(0)
    kx, kw1, kw2, kb, km = jax.random.split(key, 5)

    x = jax.random.normal(kx, (B, N, C), dtype=jnp.float32)

    # Deterministic parameter init (matching PyTorch Linear shapes).
    bound = 1.0 / math.sqrt(C)
    w_qkv = jax.random.uniform(kw1, (3 * C, C), minval=-bound, maxval=bound,
                               dtype=jnp.float32)              # qkv.weight (3C, C)
    w_proj = jax.random.uniform(kw2, (C, C), minval=-bound, maxval=bound,
                                dtype=jnp.float32)             # proj.weight (C, C)
    b_proj = jax.random.uniform(kb, (C,), minval=-bound, maxval=bound,
                                dtype=jnp.float32)             # proj.bias (C,)

    # Boolean key-padding-style mask, first token always valid.
    mask = jax.random.bernoulli(km, p=0.7, shape=(B, N))
    mask = mask.at[:, 0].set(True)

    ref = reference(x, mask, w_qkv, w_proj, b_proj, num_heads=num_heads)

    # f32 compute path (exact reciprocal): tight tolerance.
    out_f32 = masked_attention(x, mask, w_qkv, w_proj, b_proj,
                               num_heads=num_heads, compute_dtype=jnp.float32)
    out_f32 = jax.block_until_ready(out_f32)
    np.testing.assert_allclose(np.asarray(out_f32), np.asarray(ref),
                               rtol=2e-4, atol=2e-4)

    # bf16 MXU path (default, performance mode) -- looser tolerance.
    out_bf16 = masked_attention(x, mask, w_qkv, w_proj, b_proj,
                                num_heads=num_heads, compute_dtype=jnp.bfloat16)
    out_bf16 = jax.block_until_ready(out_bf16)
    np.testing.assert_allclose(np.asarray(out_bf16), np.asarray(ref),
                               rtol=5e-2, atol=5e-2)

    print("KERNEL_OK")
</pallas_src>

<mosaic_0001>
module attributes {stable_mosaic.version = 11 : i64} {
  func.func @masked_attention_kernel(%arg0: i32, %arg1: memref<1x8x32xf32, #tpu.memory_space<vmem>>, %arg2: memref<1x1x8xf32, #tpu.memory_space<vmem>>, %arg3: memref<1x8x1xf32, #tpu.memory_space<vmem>>, %arg4: memref<32x96xf32, #tpu.memory_space<vmem>>, %arg5: memref<32x32xf32, #tpu.memory_space<vmem>>, %arg6: memref<1x32xf32, #tpu.memory_space<vmem>>, %arg7: memref<1x8x32xf32, #tpu.memory_space<vmem>>) attributes {dimension_semantics = [#tpu.dimension_semantics<parallel>], iteration_bounds = array<i64: 2>, scalar_prefetch = 0 : i64, scratch_operands = 0 : i64, tpu.core_type = #tpu.core_type<tc>, window_params = [{transform_indices = @transform_0, window_bounds = array<i64: 1, 8, 32>}, {transform_indices = @transform_1, window_bounds = array<i64: 1, 1, 8>}, {transform_indices = @transform_2, window_bounds = array<i64: 1, 8, 1>}, {pipeline_mode = #tpu.pipeline_mode<synchronous>, transform_indices = @transform_3, window_bounds = array<i64: 32, 96>}, {pipeline_mode = #tpu.pipeline_mode<synchronous>, transform_indices = @transform_4, window_bounds = array<i64: 32, 32>}, {pipeline_mode = #tpu.pipeline_mode<synchronous>, transform_indices = @transform_5, window_bounds = array<i64: 1, 32>}, {transform_indices = @transform_6, window_bounds = array<i64: 1, 8, 32>}]} {
    %c0 = arith.constant 0 : index
    %c0_0 = arith.constant 0 : index
    %c0_1 = arith.constant 0 : index
    %0 = vector.load %arg1[%c0, %c0_0, %c0_1] : memref<1x8x32xf32, #tpu.memory_space<vmem>>, vector<1x8x32xf32>
    %1 = vector.shape_cast %0 : vector<1x8x32xf32> to vector<8x32xf32>
    %c0_2 = arith.constant 0 : index
    %c0_3 = arith.constant 0 : index
    %2 = vector.load %arg4[%c0_2, %c0_3] : memref<32x96xf32, #tpu.memory_space<vmem>>, vector<32x96xf32>
    %cst = arith.constant dense<0.000000e+00> : vector<8x96xf32>
    %3 = tpu.matmul %1, %2, %cst {dimension_numbers = #tpu.dot_dimension_numbers<[1], [0], [0], [1], [0, 0, 1, 1], [], []>} : vector<8x32xf32>, vector<32x96xf32>, vector<8x96xf32> -> vector<8x96xf32>
    %4 = vector.shape_cast %3 : vector<8x96xf32> to vector<1x8x24x4xf32>
    %5 = tpu.transpose %4, [2, 0, 1, 3] : vector<1x8x24x4xf32> -> vector<24x1x8x4xf32>
    %6 = vector.extract_strided_slice %5 {offsets = [0, 0, 0, 0], sizes = [8, 1, 8, 4], strides = [1, 1, 1, 1]} : vector<24x1x8x4xf32> to vector<8x1x8x4xf32>
    %7 = vector.shape_cast %6 : vector<8x1x8x4xf32> to vector<8x8x4xf32>
    %8 = vector.extract_strided_slice %5 {offsets = [8, 0, 0, 0], sizes = [8, 1, 8, 4], strides = [1, 1, 1, 1]} : vector<24x1x8x4xf32> to vector<8x1x8x4xf32>
    %9 = vector.shape_cast %8 : vector<8x1x8x4xf32> to vector<8x8x4xf32>
    %10 = vector.extract_strided_slice %5 {offsets = [16, 0, 0, 0], sizes = [8, 1, 8, 4], strides = [1, 1, 1, 1]} : vector<24x1x8x4xf32> to vector<8x1x8x4xf32>
    %11 = vector.shape_cast %10 : vector<8x1x8x4xf32> to vector<8x8x4xf32>
    "tpu.trace_start"() <{level = 10 : i32, message = "gqd,gkd->gqk"}> : () -> ()
    %cst_4 = arith.constant dense<0.000000e+00> : vector<8x8x8xf32>
    %12 = tpu.matmul %7, %9, %cst_4 {dimension_numbers = #tpu.dot_dimension_numbers<[2], [2], [1], [1], [0, 0, 0, 1, 1, 1], [0], [0]>} : vector<8x8x4xf32>, vector<8x8x4xf32>, vector<8x8x8xf32> -> vector<8x8x8xf32>
    "tpu.trace_stop"() : () -> ()
    %13 = vector.shape_cast %12 : vector<8x8x8xf32> to vector<8x1x8x8xf32>
    %c0_5 = arith.constant 0 : index
    %c0_6 = arith.constant 0 : index
    %c0_7 = arith.constant 0 : index
    %14 = vector.load %arg3[%c0_5, %c0_6, %c0_7] : memref<1x8x1xf32, #tpu.memory_space<vmem>>, vector<1x8x1xf32>
    %cst_8 = arith.constant 5.000000e-01 : f32
    %15 = vector.broadcast %cst_8 : f32 to vector<1x8x1xf32>
    %16 = arith.cmpf ogt, %14, %15 : vector<1x8x1xf32>
    %c0_9 = arith.constant 0 : index
    %c0_10 = arith.constant 0 : index
    %c0_11 = arith.constant 0 : index
    %17 = vector.load %arg2[%c0_9, %c0_10, %c0_11] : memref<1x1x8xf32, #tpu.memory_space<vmem>>, vector<1x1x8xf32>
    %cst_12 = arith.constant 5.000000e-01 : f32
    %18 = vector.broadcast %cst_12 : f32 to vector<1x1x8xf32>
    %19 = arith.cmpf ogt, %17, %18 : vector<1x1x8xf32>
    %20 = vector.broadcast %16 : vector<1x8x1xi1> to vector<1x8x8xi1>
    %21 = vector.broadcast %19 : vector<1x1x8xi1> to vector<1x8x8xi1>
    %22 = arith.andi %20, %21 : vector<1x8x8xi1>
    %23 = vector.shape_cast %22 : vector<1x8x8xi1> to vector<1x1x8x8xi1>
    %cst_13 = arith.constant -1.000000e+30 : f32
    %24 = vector.shape_cast %23 : vector<1x1x8x8xi1> to vector<1x1x8x8xi1>
    %25 = vector.broadcast %24 : vector<1x1x8x8xi1> to vector<8x1x8x8xi1>
    %26 = vector.broadcast %cst_13 : f32 to vector<8x1x8x8xf32>
    %27 = arith.select %25, %13, %26 : vector<8x1x8x8xi1>, vector<8x1x8x8xf32>
    %cst_14 = arith.constant dense<0xFF800000> : vector<8x1x8xf32>
    %28 = vector.multi_reduction <maximumf>, %27, %cst_14 [3] : vector<8x1x8x8xf32> to vector<8x1x8xf32>
    %29 = vector.shape_cast %28 : vector<8x1x8xf32> to vector<8x1x8x1xf32>
    %30 = vector.broadcast %29 : vector<8x1x8x1xf32> to vector<8x1x8x8xf32>
    %31 = arith.subf %27, %30 : vector<8x1x8x8xf32>
    %32 = math.exp %31 : vector<8x1x8x8xf32>
    %cst_15 = arith.constant dense<0.000000e+00> : vector<8x1x8xf32>
    %33 = vector.multi_reduction <add>, %32, %cst_15 [3] : vector<8x1x8x8xf32> to vector<8x1x8xf32>
    %34 = vector.shape_cast %33 : vector<8x1x8xf32> to vector<8x1x8x1xf32>
    %35 = vector.broadcast %34 : vector<8x1x8x1xf32> to vector<8x1x8x8xf32>
    %36 = arith.divf %32, %35 : vector<8x1x8x8xf32>
    %37 = vector.shape_cast %36 : vector<8x1x8x8xf32> to vector<8x8x8xf32>
    "tpu.trace_start"() <{level = 10 : i32, message = "gqk,gkd->gqd"}> : () -> ()
    %cst_16 = arith.constant dense<0.000000e+00> : vector<8x8x4xf32>
    %38 = tpu.matmul %37, %11, %cst_16 {dimension_numbers = #tpu.dot_dimension_numbers<[2], [1], [1], [2], [0, 0, 0, 1, 1, 2], [0], [0]>} : vector<8x8x8xf32>, vector<8x8x4xf32>, vector<8x8x4xf32> -> vector<8x8x4xf32>
    "tpu.trace_stop"() : () -> ()
    %39 = vector.shape_cast %38 : vector<8x8x4xf32> to vector<8x1x8x4xf32>
    %40 = tpu.transpose %39, [1, 2, 0, 3] : vector<8x1x8x4xf32> -> vector<1x8x8x4xf32>
    %41 = vector.shape_cast %40 : vector<1x8x8x4xf32> to vector<8x32xf32>
    %c0_17 = arith.constant 0 : index
    %c0_18 = arith.constant 0 : index
    %42 = vector.load %arg5[%c0_17, %c0_18] : memref<32x32xf32, #tpu.memory_space<vmem>>, vector<32x32xf32>
    %cst_19 = arith.constant dense<0.000000e+00> : vector<8x32xf32>
    %43 = tpu.matmul %41, %42, %cst_19 {dimension_numbers = #tpu.dot_dimension_numbers<[1], [0], [0], [1], [0, 0, 1, 1], [], []>} : vector<8x32xf32>, vector<32x32xf32>, vector<8x32xf32> -> vector<8x32xf32>
    %c0_20 = arith.constant 0 : index
    %c0_21 = arith.constant 0 : index
    %44 = vector.load %arg6[%c0_20, %c0_21] : memref<1x32xf32, #tpu.memory_space<vmem>>, vector<1x32xf32>
    %45 = vector.broadcast %44 : vector<1x32xf32> to vector<8x32xf32>
    %46 = arith.addf %43, %45 : vector<8x32xf32>
    %47 = vector.shape_cast %46 : vector<8x32xf32> to vector<1x8x32xf32>
    %c0_22 = arith.constant 0 : index
    %c0_23 = arith.constant 0 : index
    %c0_24 = arith.constant 0 : index
    %48 = vector.load %arg7[%c0_22, %c0_23, %c0_24] : memref<1x8x32xf32, #tpu.memory_space<vmem>>, vector<1x8x32xf32>
    tpu.vector_store %arg7[%c0_22, %c0_23, %c0_24], %47 {strides = array<i32>} : memref<1x8x32xf32, #tpu.memory_space<vmem>>, vector<1x8x32xf32>,
    return
  }
  func.func @transform_0(%arg0: i32) -> (i32, i32, i32) {
    %c0_i32 = arith.constant 0 : i32
    %c0_i32_0 = arith.constant 0 : i32
    %c0_i32_1 = arith.constant 0 : i32
    return %arg0, %c0_i32, %c0_i32_0 : i32, i32, i32
  }
  func.func @transform_1(%arg0: i32) -> (i32, i32, i32) {
    %c0_i32 = arith.constant 0 : i32
    %c0_i32_0 = arith.constant 0 : i32
    %c0_i32_1 = arith.constant 0 : i32
    return %arg0, %c0_i32, %c0_i32_0 : i32, i32, i32
  }
  func.func @transform_2(%arg0: i32) -> (i32, i32, i32) {
    %c0_i32 = arith.constant 0 : i32
    %c0_i32_0 = arith.constant 0 : i32
    %c0_i32_1 = arith.constant 0 : i32
    return %arg0, %c0_i32, %c0_i32_0 : i32, i32, i32
  }
  func.func @transform_3(%arg0: i32) -> (i32, i32) {
    %c0_i32 = arith.constant 0 : i32
    %c0_i32_0 = arith.constant 0 : i32
    %c0_i32_1 = arith.constant 0 : i32
    return %c0_i32, %c0_i32_0 : i32, i32
  }
  func.func @transform_4(%arg0: i32) -> (i32, i32) {
    %c0_i32 = arith.constant 0 : i32
    %c0_i32_0 = arith.constant 0 : i32
    %c0_i32_1 = arith.constant 0 : i32
    return %c0_i32, %c0_i32_0 : i32, i32
  }
  func.func @transform_5(%arg0: i32) -> (i32, i32) {
    %c0_i32 = arith.constant 0 : i32
    %c0_i32_0 = arith.constant 0 : i32
    %c0_i32_1 = arith.constant 0 : i32
    return %c0_i32, %c0_i32_0 : i32, i32
  }
  func.func @transform_6(%arg0: i32) -> (i32, i32, i32) {
    %c0_i32 = arith.constant 0 : i32
    %c0_i32_0 = arith.constant 0 : i32
    %c0_i32_1 = arith.constant 0 : i32
    return %arg0, %c0_i32, %c0_i32_0 : i32, i32, i32
  }
}

</mosaic_0001>

<llo_original>
// kernel: tpu_custom_call.1
$region0: #{tpu_custom_call.1}
  #allocation0 [shape = 'u32[]', space=smem, size = 0x4, offset = 0x4, fixed_abs, tag = 'smem constant byte address 0x4 - core index']
  #allocation1 [shape = 'u32[72,128]{1,0:T(1,128)}', space=vmem, size = 0x9000, scoped, tag = 'internal scratch']
  %s0 = inlined_call_operand.vmem [shape: f32[2,8,32], index: 0, kind: input, shape index: {}]
  %s1 = inlined_call_operand.vmem [shape: f32[2,1,8], index: 1, kind: input, shape index: {}]
  %s2 = inlined_call_operand.vmem [shape: f32[2,8,1], index: 2, kind: input, shape index: {}]
  %s3 = inlined_call_operand.hbm [shape: f32[32,96], index: 3, kind: input, shape index: {}]
  %s4 = inlined_call_operand.hbm [shape: f32[32,32], index: 4, kind: input, shape index: {}]
  %s5 = inlined_call_operand.vmem [shape: f32[1,32], index: 5, kind: input, shape index: {}]
  %s6 = inlined_call_operand.hbm [shape: f32[2,8,32], index: 6, kind: output, shape index: {}]
  %s7 = sld [smem:[#allocation0]]
  $region65: #{tpu_custom_call.1} parent=0
    _
  %s9 = ssub.s32 1, %s7
  %s10 = scalar_select 0, %s9, %s7
  $region1: #{tpu_custom_call.1} parent=0
    #allocation2 [shape = 'u8[16384]{0}', space=vmem, size = 0x4000, scoped, tag = 'input window, operand 3, single buffered']
    #allocation3 [shape = 's32[2]{0}', space=sflag, size = 0x8, scoped, tag = 'scoped memory for tpu_custom_call.1']
    #allocation4 [shape = 's32[2]{0}', space=sflag, size = 0x8, scoped, tag = 'scoped memory for tpu_custom_call.1']
    #allocation5 [shape = 'u8[16384]{0}', space=vmem, size = 0x4000, scoped, tag = 'input window, operand 4, single buffered']
    #allocation6 [shape = 's32[1]{0}', space=sflag, size = 0x4, scoped, tag = 'scoped memory for tpu_custom_call.1']
    #allocation7 [shape = 'u8[8192]{0}', space=vmem, size = 0x2000, scoped, tag = 'output window, operand 0']
    %11 = vsyncpa [#allocation3], 0
    %12 = vsyncpa [#allocation6], 0
    %13 = vsyncpa [#allocation4], 0
    %s14 = scalar_lea.sflag [#allocation4], 1
    %15 = vsyncpa %s14, 0
    loop: start=0, step=1, limit=4
    $region2: #{tpu_custom_call.1} parent=1 // loop_pre_header
      _
    $region3: #{tpu_custom_call.1} parent=1 // loop_header
      %s17 = sphi 0, %s21
      %p18 = scmp.ge.s32.totalorder %s17, 4
      %s27 = sphi 0, %s29
      %s30 = sphi 0, %s27
      %s31 = sphi 0, %s30
      %s47 = sphi 0, %s31
      %s53 = sphi 0, %s55
      %s56 = sphi 0, %s53
      %s57 = sphi 0, %s56
      %s73 = sphi 0, %s57
      %s79 = sphi 0, %s81
      %s82 = sphi 0, %s79
      %s83 = sphi 0, %s82
      %s99 = sphi 0, %s83
      %s103 = sphi 0, %s103
      %s105 = sphi 0, %s103
      %s106 = sphi 0, %s105
      %s120 = sphi 0, %s106
      %s124 = sphi 0, %s124
      %s126 = sphi 0, %s124
      %s127 = sphi 0, %s126
      %s141 = sphi 0, %s127
      %s145 = sphi 0, %s145
      %s147 = sphi 0, %s145
      %s148 = sphi 0, %s147
      %s162 = sphi 0, %s148
      %s168 = sphi 0, %s170
      %s171 = sphi 0, %s168
      %s172 = sphi 0, %s171
      %s188 = sphi 0, %s172
    $region4: #{tpu_custom_call.1} parent=1 // loop_header_branch
      %20 = sbr.rel (%p18) target = $region8
    $region5: #{tpu_custom_call.1} parent=1 // loop_body
      %s22 = ssub.s32 %s17, 1
      %s23 = ssub.s32 %s17, 2
      %s24 = sadd.s32 %s17, 1
      %s25 = ssub.s32 %s17, %s24
      %p26 = scmp.eq.s32.totalorder %s25, 0
      %s28 = sadd.s32 %s27, 1
      %s29 = scalar_select %p26, %s27, %s28
      %p32 = pneg %p26
      %p33 = scmp.eq.s32.totalorder %s17, 1
      %p34 = por %p32, %p33
      %p35 = scmp.ne.s32.totalorder %s27, %s30
      %p36 = scmp.eq.s32.totalorder %s17, 0
      %p37 = por %p35, %p36
      %p38 = scmp.ne.s32.totalorder %s27, %s30
      %p39 = scmp.eq.s32.totalorder %s22, 1
      %p40 = por %p38, %p39
      %p41 = scmp.ne.s32.totalorder %s30, %s31
      %p42 = scmp.eq.s32.totalorder %s22, 0
      %p43 = por %p41, %p42
      %p44 = scmp.ne.s32.totalorder %s30, %s31
      %p45 = scmp.eq.s32.totalorder %s23, 1
      %p46 = por %p44, %p45
      %p48 = scmp.ne.s32.totalorder %s31, %s47
      %p49 = scmp.eq.s32.totalorder %s23, 0
      %p50 = por %p48, %p49
      %s51 = ssub.s32 %s17, %s24
      %p52 = scmp.eq.s32.totalorder %s51, 0
      %s54 = sadd.s32 %s53, 1
      %s55 = scalar_select %p52, %s53, %s54
      %p58 = pneg %p52
      %p59 = scmp.eq.s32.totalorder %s17, 1
      %p60 = por %p58, %p59
      %p61 = scmp.ne.s32.totalorder %s53, %s56
      %p62 = scmp.eq.s32.totalorder %s17, 0
      %p63 = por %p61, %p62
      %p64 = scmp.ne.s32.totalorder %s53, %s56
      %p65 = scmp.eq.s32.totalorder %s22, 1
      %p66 = por %p64, %p65
      %p67 = scmp.ne.s32.totalorder %s56, %s57
      %p68 = scmp.eq.s32.totalorder %s22, 0
      %p69 = por %p67, %p68
      %p70 = scmp.ne.s32.totalorder %s56, %s57
      %p71 = scmp.eq.s32.totalorder %s23, 1
      %p72 = por %p70, %p71
      %p74 = scmp.ne.s32.totalorder %s57, %s73
      %p75 = scmp.eq.s32.totalorder %s23, 0
      %p76 = por %p74, %p75
      %s77 = ssub.s32 %s17, %s24
      %p78 = scmp.eq.s32.totalorder %s77, 0
      %s80 = sadd.s32 %s79, 1
      %s81 = scalar_select %p78, %s79, %s80
      %p84 = pneg %p78
      %p85 = scmp.eq.s32.totalorder %s17, 1
      %p86 = por %p84, %p85
      %p87 = scmp.ne.s32.totalorder %s79, %s82
      %p88 = scmp.eq.s32.totalorder %s17, 0
      %p89 = por %p87, %p88
      %p90 = scmp.ne.s32.totalorder %s79, %s82
      %p91 = scmp.eq.s32.totalorder %s22, 1
      %p92 = por %p90, %p91
      %p93 = scmp.ne.s32.totalorder %s82, %s83
      %p94 = scmp.eq.s32.totalorder %s22, 0
      %p95 = por %p93, %p94
      %p96 = scmp.ne.s32.totalorder %s82, %s83
      %p97 = scmp.eq.s32.totalorder %s23, 1
      %p98 = por %p96, %p97
      %p100 = scmp.ne.s32.totalorder %s83, %s99
      %p101 = scmp.eq.s32.totalorder %s23, 0
      %p102 = por %p100, %p101
      %s104 = sadd.s32 %s103, 1
      %p107 = scmp.eq.s32.totalorder %s17, 1
      %p108 = scmp.ne.s32.totalorder %s103, %s105
      %p109 = scmp.eq.s32.totalorder %s17, 0
      %p110 = por %p108, %p109
      %p111 = scmp.ne.s32.totalorder %s103, %s105
      %p112 = scmp.eq.s32.totalorder %s22, 1
      %p113 = por %p111, %p112
      %p114 = scmp.ne.s32.totalorder %s105, %s106
      %p115 = scmp.eq.s32.totalorder %s22, 0
      %p116 = por %p114, %p115
      %p117 = scmp.ne.s32.totalorder %s105, %s106
      %p118 = scmp.eq.s32.totalorder %s23, 1
      %p119 = por %p117, %p118
      %p121 = scmp.ne.s32.totalorder %s106, %s120
      %p122 = scmp.eq.s32.totalorder %s23, 0
      %p123 = por %p121, %p122
      %s125 = sadd.s32 %s124, 1
      %p128 = scmp.eq.s32.totalorder %s17, 1
      %p129 = scmp.ne.s32.totalorder %s124, %s126
      %p130 = scmp.eq.s32.totalorder %s17, 0
      %p131 = por %p129, %p130
      %p132 = scmp.ne.s32.totalorder %s124, %s126
      %p133 = scmp.eq.s32.totalorder %s22, 1
      %p134 = por %p132, %p133
      %p135 = scmp.ne.s32.totalorder %s126, %s127
      %p136 = scmp.eq.s32.totalorder %s22, 0
      %p137 = por %p135, %p136
      %p138 = scmp.ne.s32.totalorder %s126, %s127
      %p139 = scmp.eq.s32.totalorder %s23, 1
      %p140 = por %p138, %p139
      %p142 = scmp.ne.s32.totalorder %s127, %s141
      %p143 = scmp.eq.s32.totalorder %s23, 0
      %p144 = por %p142, %p143
      %s146 = sadd.s32 %s145, 1
      %p149 = scmp.eq.s32.totalorder %s17, 1
      %p150 = scmp.ne.s32.totalorder %s145, %s147
      %p151 = scmp.eq.s32.totalorder %s17, 0
      %p152 = por %p150, %p151
      %p153 = scmp.ne.s32.totalorder %s145, %s147
      %p154 = scmp.eq.s32.totalorder %s22, 1
      %p155 = por %p153, %p154
      %p156 = scmp.ne.s32.totalorder %s147, %s148
      %p157 = scmp.eq.s32.totalorder %s22, 0
      %p158 = por %p156, %p157
      %p159 = scmp.ne.s32.totalorder %s147, %s148
      %p160 = scmp.eq.s32.totalorder %s23, 1
      %p161 = por %p159, %p160
      %p163 = scmp.ne.s32.totalorder %s148, %s162
      %p164 = scmp.eq.s32.totalorder %s23, 0
      %p165 = por %p163, %p164
      %s166 = ssub.s32 %s17, %s24
      %p167 = scmp.eq.s32.totalorder %s166, 0
      %s169 = sadd.s32 %s168, 1
      %s170 = scalar_select %p167, %s168, %s169
      %p173 = pneg %p167
      %p174 = scmp.eq.s32.totalorder %s17, 1
      %p175 = por %p173, %p174
      %p176 = scmp.ne.s32.totalorder %s168, %s171
      %p177 = scmp.eq.s32.totalorder %s17, 0
      %p178 = por %p176, %p177
      %p179 = scmp.ne.s32.totalorder %s168, %s171
      %p180 = scmp.eq.s32.totalorder %s22, 1
      %p181 = por %p179, %p180
      %p182 = scmp.ne.s32.totalorder %s171, %s172
      %p183 = scmp.eq.s32.totalorder %s22, 0
      %p184 = por %p182, %p183
      %p185 = scmp.ne.s32.totalorder %s171, %s172
      %p186 = scmp.eq.s32.totalorder %s23, 1
      %p187 = por %p185, %p186
      %p189 = scmp.ne.s32.totalorder %s172, %s188
      %p190 = scmp.eq.s32.totalorder %s23, 0
      %p191 = por %p189, %p190
      %p192 = scmp.le.s32.totalorder 1, %s17
      %p193 = scmp.lt.s32.totalorder %s17, 3
      %p194 = pnand %p192, %p193
      %p195 = pneg %p194
      // Predicated region
      $region9: #{tpu_custom_call.1} parent=5 // pred_check
        _
      $region10: #{tpu_custom_call.1} parent=5 // pred_check_branch
        %197 = sbr.rel (%p194) target = $region12
      $region11: #{tpu_custom_call.1} parent=5 // pred_region
        %s198 = ssub.s32 %s17, 1
        // Predicated region
        $region13: #{tpu_custom_call.1} parent=11 // pred_check
          %p199 = pneg %p116
        $region14: #{tpu_custom_call.1} parent=11 // pred_check_branch
          %201 = sbr.rel (%p199) target = $region16
        $region15: #{tpu_custom_call.1} parent=11 // pred_region
          %203 = vsyncadd [#allocation3], 0
          %s204 = sshll.u32 %s3, 4
          %s205 = int_to_ptr.hbm [resolvable:$true] %s204
          %s206 = sshll.u32 [#allocation2], 4
          %s207 = int_to_ptr.vmem [resolvable:$true] %s206
          %212 = dma.hbm_to_vmem [thread:$0]  %s205, 512, %s207, [#allocation3], 128, 128, 8
        $region16: #{tpu_custom_call.1} parent=11 // pred_fallthru
          _
        // Predicated region
        $region17: #{tpu_custom_call.1} parent=11 // pred_check
          %p213 = pneg %p137
        $region18: #{tpu_custom_call.1} parent=11 // pred_check_branch
          %215 = sbr.rel (%p213) target = $region20
        $region19: #{tpu_custom_call.1} parent=11 // pred_region
          %217 = vsyncadd [#allocation6], 0
          %s218 = sshll.u32 %s4, 4
          %s219 = int_to_ptr.hbm [resolvable:$true] %s218
          %s220 = sshll.u32 [#allocation5], 4
          %s221 = int_to_ptr.vmem [resolvable:$true] %s220
          %226 = dma.hbm_to_vmem [thread:$0]  %s219, 512, %s221, [#allocation6], 128, 128, 8
        $region20: #{tpu_custom_call.1} parent=11 // pred_fallthru
          _
        // Predicated region
        $region21: #{tpu_custom_call.1} parent=11 // pred_check
          %p227 = pneg %p158
        $region22: #{tpu_custom_call.1} parent=11 // pred_check_branch
          %229 = sbr.rel (%p227) target = $region24
        $region23: #{tpu_custom_call.1} parent=11 // pred_region
          _
        $region24: #{tpu_custom_call.1} parent=11 // pred_fallthru
          _
      $region12: #{tpu_custom_call.1} parent=5 // pred_fallthru
        _
      %p230 = scmp.lt.s32.totalorder %s17, 2
      // Predicated region
      $region25: #{tpu_custom_call.1} parent=5 // pred_check
        %p231 = pneg %p230
      $region26: #{tpu_custom_call.1} parent=5 // pred_check_branch
        %233 = sbr.rel (%p231) target = $region28
      $region27: #{tpu_custom_call.1} parent=5 // pred_region
        // Predicated region
        $region29: #{tpu_custom_call.1} parent=27 // pred_check
          %p234 = pneg %p37
        $region30: #{tpu_custom_call.1} parent=27 // pred_check_branch
          %236 = sbr.rel (%p234) target = $region32
        $region31: #{tpu_custom_call.1} parent=27 // pred_region
          %p237 = scmp.lt.s32.totalorder %s17, 1
          %s238 = scalar_select %p237, %s17, 1
          %s239 = smul.addr %s238, 8
          %s240 = scalar_lea.vmem %s0, %s239
        $region32: #{tpu_custom_call.1} parent=27 // pred_fallthru
          _
        // Predicated region
        $region33: #{tpu_custom_call.1} parent=27 // pred_check
          %p241 = pneg %p63
        $region34: #{tpu_custom_call.1} parent=27 // pred_check_branch
          %243 = sbr.rel (%p241) target = $region36
        $region35: #{tpu_custom_call.1} parent=27 // pred_region
          %p244 = scmp.lt.s32.totalorder %s17, 1
          %s245 = scalar_select %p244, %s17, 1
          %s246 = scalar_lea.vmem %s1, %s245
        $region36: #{tpu_custom_call.1} parent=27 // pred_fallthru
          _
        // Predicated region
        $region37: #{tpu_custom_call.1} parent=27 // pred_check
          %p247 = pneg %p89
        $region38: #{tpu_custom_call.1} parent=27 // pred_check_branch
          %249 = sbr.rel (%p247) target = $region40
        $region39: #{tpu_custom_call.1} parent=27 // pred_region
          %p250 = scmp.lt.s32.totalorder %s17, 1
          %s251 = scalar_select %p250, %s17, 1
          %s252 = smul.addr %s251, 8
          %s253 = scalar_lea.vmem %s2, %s252
        $region40: #{tpu_custom_call.1} parent=27 // pred_fallthru
          _
      $region28: #{tpu_custom_call.1} parent=5 // pred_fallthru
        _
      %p254 = scmp.le.s32.totalorder 1, %s17
      %p255 = scmp.lt.s32.totalorder %s17, 3
      %p256 = pnand %p254, %p255
      %p257 = pneg %p256
      // Predicated region
      $region41: #{tpu_custom_call.1} parent=5 // pred_check
        _
      $region42: #{tpu_custom_call.1} parent=5 // pred_check_branch
        %259 = sbr.rel (%p256) target = $region44
      $region43: #{tpu_custom_call.1} parent=5 // pred_region
        %s260 = ssub.s32 %s17, 1
        // Predicated region
        $region45: #{tpu_custom_call.1} parent=43 // pred_check
          %p261 = pneg %p116
        $region46: #{tpu_custom_call.1} parent=43 // pred_check_branch
          %263 = sbr.rel (%p261) target = $region48
        $region47: #{tpu_custom_call.1} parent=43 // pred_region
          %265 = dma.done [#allocation3], 512
        $region48: #{tpu_custom_call.1} parent=43 // pred_fallthru
          _
        // Predicated region
        $region49: #{tpu_custom_call.1} parent=43 // pred_check
          %p266 = pneg %p137
        $region50: #{tpu_custom_call.1} parent=43 // pred_check_branch
          %268 = sbr.rel (%p266) target = $region52
        $region51: #{tpu_custom_call.1} parent=43 // pred_region
          %270 = dma.done [#allocation6], 512
        $region52: #{tpu_custom_call.1} parent=43 // pred_fallthru
          _
        %p271 = scmp.lt.s32.totalorder %s22, 1
        %s272 = scalar_select %p271, %s22, 1
        %s273 = smul.addr %s272, 8
        %s274 = scalar_lea.vmem %s0, %s273
        %p275 = pneg %p43
        %p276 = pneg %p40
        %p277 = scmp.lt.s32.totalorder %s22, 1
        %s278 = scalar_select %p277, %s22, 1
        %s279 = scalar_lea.vmem %s1, %s278
        %p280 = pneg %p69
        %p281 = pneg %p66
        %p282 = scmp.lt.s32.totalorder %s22, 1
        %s283 = scalar_select %p282, %s22, 1
        %s284 = smul.addr %s283, 8
        %s285 = scalar_lea.vmem %s2, %s284
        %p286 = pneg %p95
        %p287 = pneg %p92
        %p288 = pneg %p116
        %p289 = pneg %p113
        %p290 = pneg %p137
        %p291 = pneg %p134
        %p292 = pneg %p158
        %p293 = pneg %p155
        %p294 = pneg %p184
        %p295 = pneg %p181
        %s296 = sand.u32 %s171, 1
        %s297 = scalar_lea.sflag [#allocation4], %s296
        %s298 = sand.u32 %s171, 1
        %s299 = smul.addr %s298, 8
        %s300 = scalar_lea.vmem [#allocation7], %s299
        %p301 = scmp.lt.s32.totalorder %s22, 1
        %s302 = scalar_select %p301, %s22, 1
        %s303 = smul.addr %s302, 8
        %s304 = scalar_lea.vmem %s0, %s303
        %p305 = scmp.lt.s32.totalorder %s22, 1
        %s306 = scalar_select %p305, %s22, 1
        %s307 = scalar_lea.vmem %s1, %s306
        %p308 = scmp.lt.s32.totalorder %s22, 1
        %s309 = scalar_select %p308, %s22, 1
        %s310 = smul.addr %s309, 8
        %s311 = scalar_lea.vmem %s2, %s310
        %v312 = vld [vmem:[%s304] sm:$0xff]
        %v313 = vld [vmem:[#allocation2] sm:$0xff]
        %v314 = vld [vmem:[#allocation2 + $0x8] sm:$0xff]
        %v315 = vld [vmem:[#allocation2 + $0x10] sm:$0xff]
        %v316 = vld [vmem:[#allocation2 + $0x18] sm:$0xff]
        %vm317 = vcmask 261120
        %v319 = vsel %vm317, %v312, 0
        %321 = vmatpush.msra.mxu0 0.0
        %322 = vmatpush.msra.mxu0 0.0
        %323 = vmatpush.msra.mxu0 0.0
        %324 = vmatpush.msra.mxu0 0.0
        %325 = vmatpush.msra.mxu0 0.0
        %326 = vmatpush.msra.mxu0 0.0
        %327 = vmatpush.msra.mxu0 0.0
        %328 = vmatpush.msra.mxu0 0.0
        %329 = vmatpush.msra.mxu0 0.0
        %330 = vmatpush.msra.mxu0 0.0
        %331 = vmatpush.msra.mxu0 0.0
        %332 = vmatpush.msra.mxu0 0.0
        %333 = vmatpush.msra.mxu0 %v316
        %334 = vmatpush.msra.mxu0 %v315
        %335 = vmatpush.msra.mxu0 %v314
        %336 = vmatpush.msra.mxu0 %v313
        %337 = vmatmul.f32.gmra.mxu0 %v319
        %v338 = vpop.f32.mrf.mxu0
        %v339 = vadd.f32 0.0, %v338
        %340 = vdwg.mxu0
        %342 = vrot.lane.b32.xlu0 %v339, 124
        %v343 = vpop.permute.xlu0 %342
        %345 = vrot.lane.b32.xlu0 %v339, 120
        %v346 = vpop.permute.xlu0 %345
        %348 = vrot.lane.b32.xlu0 %v339, 116
        %v349 = vpop.permute.xlu0 %348
        %351 = vrot.lane.b32.xlu0 %v339, 112
        %v352 = vpop.permute.xlu0 %351
        %354 = vrot.lane.b32.xlu0 %v339, 108
        %v355 = vpop.permute.xlu0 %354
        %357 = vrot.lane.b32.xlu0 %v339, 104
        %v358 = vpop.permute.xlu0 %357
        %360 = vrot.lane.b32.xlu0 %v339, 100
        %v361 = vpop.permute.xlu0 %360
        %363 = vrot.lane.b32.xlu0 %v339, 96
        %v364 = vpop.permute.xlu0 %363
        %366 = vrot.lane.b32.xlu0 %v339, 92
        %v367 = vpop.permute.xlu0 %366
        %369 = vrot.lane.b32.xlu0 %v339, 88
        %v370 = vpop.permute.xlu0 %369
        %372 = vrot.lane.b32.xlu0 %v339, 84
        %v373 = vpop.permute.xlu0 %372
        %375 = vrot.lane.b32.xlu0 %v339, 80
        %v376 = vpop.permute.xlu0 %375
        %378 = vrot.lane.b32.xlu0 %v339, 76
        %v379 = vpop.permute.xlu0 %378
        %381 = vrot.lane.b32.xlu0 %v339, 72
        %v382 = vpop.permute.xlu0 %381
        %384 = vrot.lane.b32.xlu0 %v339, 68
        %v385 = vpop.permute.xlu0 %384
        %387 = vrot.lane.b32.xlu0 %v339, 64
        %v388 = vpop.permute.xlu0 %387
        %390 = vrot.lane.b32.xlu0 %v339, 60
        %v391 = vpop.permute.xlu0 %390
        %393 = vrot.lane.b32.xlu0 %v339, 56
        %v394 = vpop.permute.xlu0 %393
        %396 = vrot.lane.b32.xlu0 %v339, 52
        %v397 = vpop.permute.xlu0 %396
        %399 = vrot.lane.b32.xlu0 %v339, 48
        %v400 = vpop.permute.xlu0 %399
        %402 = vrot.lane.b32.xlu0 %v339, 44
        %v403 = vpop.permute.xlu0 %402
        %405 = vrot.lane.b32.xlu0 %v339, 40
        %v406 = vpop.permute.xlu0 %405
        %408 = vrot.lane.b32.xlu0 %v339, 36
        %v409 = vpop.permute.xlu0 %408
        %v411 = vrot.slane %v346, 4
        %vm412 = vcmask 1047556
        %v413 = vsel %vm412, %v411, %v339
        %v414 = vrot.slane %v339, 4
        %v415 = vsel %vm412, %v346, %v414
        %v417 = vunpack.c.l.s4 1983009808
        %v418 = vunpack.c.0.s8 %v417
        %v419 = vperm.slane %v413, %v418
        %v421 = vunpack.c.l.s4 1983009808
        %v422 = vunpack.c.0.s8 %v421
        %v423 = vperm.slane %v415, %v422
        %v424 = vrot.slane %v349, 4
        %v425 = vsel %vm412, %v424, %v343
        %v426 = vrot.slane %v343, 4
        %v427 = vsel %vm412, %v349, %v426
        %v429 = vunpack.c.l.s4 1983009808
        %v430 = vunpack.c.0.s8 %v429
        %v431 = vperm.slane %v425, %v430
        %v433 = vunpack.c.l.s4 1983009808
        %v434 = vunpack.c.0.s8 %v433
        %v435 = vperm.slane %v427, %v434
        %v436 = vrot.slane %v358, 4
        %v437 = vsel %vm412, %v436, %v352
        %v438 = vrot.slane %v352, 4
        %v439 = vsel %vm412, %v358, %v438
        %v441 = vunpack.c.l.s4 1983009808
        %v442 = vunpack.c.0.s8 %v441
        %v443 = vperm.slane %v437, %v442
        %v445 = vunpack.c.l.s4 1983009808
        %v446 = vunpack.c.0.s8 %v445
        %v447 = vperm.slane %v439, %v446
        %v448 = vrot.slane %v361, 4
        %v449 = vsel %vm412, %v448, %v355
        %v450 = vrot.slane %v355, 4
        %v451 = vsel %vm412, %v361, %v450
        %v453 = vunpack.c.l.s4 1983009808
        %v454 = vunpack.c.0.s8 %v453
        %v455 = vperm.slane %v449, %v454
        %v457 = vunpack.c.l.s4 1983009808
        %v458 = vunpack.c.0.s8 %v457
        %v459 = vperm.slane %v451, %v458
        %v460 = vrot.slane %v431, 4
        %v461 = vsel %vm412, %v460, %v419
        %v462 = vrot.slane %v419, 4
        %v463 = vsel %vm412, %v431, %v462
        %v465 = vunpack.c.l.s4 1934713408
        %v466 = vunpack.c.0.s8 %v465
        %v467 = vperm.slane %v461, %v466
        %v469 = vunpack.c.l.s4 1934713408
        %v470 = vunpack.c.0.s8 %v469
        %v471 = vperm.slane %v463, %v470
        %v472 = vrot.slane %v435, 4
        %v473 = vsel %vm412, %v472, %v423
        %v474 = vrot.slane %v423, 4
        %v475 = vsel %vm412, %v435, %v474
        %v477 = vunpack.c.l.s4 1934713408
        %v478 = vunpack.c.0.s8 %v477
        %v479 = vperm.slane %v473, %v478
        %v481 = vunpack.c.l.s4 1934713408
        %v482 = vunpack.c.0.s8 %v481
        %v483 = vperm.slane %v475, %v482
        %v484 = vrot.slane %v455, 4
        %v485 = vsel %vm412, %v484, %v443
        %v486 = vrot.slane %v443, 4
        %v487 = vsel %vm412, %v455, %v486
        %v489 = vunpack.c.l.s4 1934713408
        %v490 = vunpack.c.0.s8 %v489
        %v491 = vperm.slane %v485, %v490
        %v493 = vunpack.c.l.s4 1934713408
        %v494 = vunpack.c.0.s8 %v493
        %v495 = vperm.slane %v487, %v494
        %v496 = vrot.slane %v459, 4
        %v497 = vsel %vm412, %v496, %v447
        %v498 = vrot.slane %v447, 4
        %v499 = vsel %vm412, %v459, %v498
        %v501 = vunpack.c.l.s4 1934713408
        %v502 = vunpack.c.0.s8 %v501
        %v503 = vperm.slane %v497, %v502
        %v505 = vunpack.c.l.s4 1934713408
        %v506 = vunpack.c.0.s8 %v505
        %v507 = vperm.slane %v499, %v506
        %v508 = vrot.slane %v491, 4
        %v509 = vsel %vm412, %v508, %v467
        %v510 = vrot.slane %v467, 4
        %v511 = vsel %vm412, %v491, %v510
        %v512 = vrot.slane %v495, 4
        %v513 = vsel %vm412, %v512, %v471
        %v514 = vrot.slane %v471, 4
        %v515 = vsel %vm412, %v495, %v514
        %v516 = vrot.slane %v503, 4
        %v517 = vsel %vm412, %v516, %v479
        %v518 = vrot.slane %v479, 4
        %v519 = vsel %vm412, %v503, %v518
        %v520 = vrot.slane %v507, 4
        %v521 = vsel %vm412, %v520, %v483
        %v522 = vrot.slane %v483, 4
        %v523 = vsel %vm412, %v507, %v522
        %v524 = vrot.slane %v370, 4
        %v525 = vsel %vm412, %v524, %v364
        %v526 = vrot.slane %v364, 4
        %v527 = vsel %vm412, %v370, %v526
        %v529 = vunpack.c.l.s4 1983009808
        %v530 = vunpack.c.0.s8 %v529
        %v531 = vperm.slane %v525, %v530
        %v533 = vunpack.c.l.s4 1983009808
        %v534 = vunpack.c.0.s8 %v533
        %v535 = vperm.slane %v527, %v534
        %v536 = vrot.slane %v373, 4
        %v537 = vsel %vm412, %v536, %v367
        %v538 = vrot.slane %v367, 4
        %v539 = vsel %vm412, %v373, %v538
        %v541 = vunpack.c.l.s4 1983009808
        %v542 = vunpack.c.0.s8 %v541
        %v543 = vperm.slane %v537, %v542
        %v545 = vunpack.c.l.s4 1983009808
        %v546 = vunpack.c.0.s8 %v545
        %v547 = vperm.slane %v539, %v546
        %v548 = vrot.slane %v382, 4
        %v549 = vsel %vm412, %v548, %v376
        %v550 = vrot.slane %v376, 4
        %v551 = vsel %vm412, %v382, %v550
        %v553 = vunpack.c.l.s4 1983009808
        %v554 = vunpack.c.0.s8 %v553
        %v555 = vperm.slane %v549, %v554
        %v557 = vunpack.c.l.s4 1983009808
        %v558 = vunpack.c.0.s8 %v557
        %v559 = vperm.slane %v551, %v558
        %v560 = vrot.slane %v385, 4
        %v561 = vsel %vm412, %v560, %v379
        %v562 = vrot.slane %v379, 4
        %v563 = vsel %vm412, %v385, %v562
        %v565 = vunpack.c.l.s4 1983009808
        %v566 = vunpack.c.0.s8 %v565
        %v567 = vperm.slane %v561, %v566
        %v569 = vunpack.c.l.s4 1983009808
        %v570 = vunpack.c.0.s8 %v569
        %v571 = vperm.slane %v563, %v570
        %v572 = vrot.slane %v543, 4
        %v573 = vsel %vm412, %v572, %v531
        %v574 = vrot.slane %v531, 4
        %v575 = vsel %vm412, %v543, %v574
        %v577 = vunpack.c.l.s4 1934713408
        %v578 = vunpack.c.0.s8 %v577
        %v579 = vperm.slane %v573, %v578
        %v581 = vunpack.c.l.s4 1934713408
        %v582 = vunpack.c.0.s8 %v581
        %v583 = vperm.slane %v575, %v582
        %v584 = vrot.slane %v547, 4
        %v585 = vsel %vm412, %v584, %v535
        %v586 = vrot.slane %v535, 4
        %v587 = vsel %vm412, %v547, %v586
        %v589 = vunpack.c.l.s4 1934713408
        %v590 = vunpack.c.0.s8 %v589
        %v591 = vperm.slane %v585, %v590
        %v593 = vunpack.c.l.s4 1934713408
        %v594 = vunpack.c.0.s8 %v593
        %v595 = vperm.slane %v587, %v594
        %v596 = vrot.slane %v567, 4
        %v597 = vsel %vm412, %v596, %v555
        %v598 = vrot.slane %v555, 4
        %v599 = vsel %vm412, %v567, %v598
        %v601 = vunpack.c.l.s4 1934713408
        %v602 = vunpack.c.0.s8 %v601
        %v603 = vperm.slane %v597, %v602
        %v605 = vunpack.c.l.s4 1934713408
        %v606 = vunpack.c.0.s8 %v605
        %v607 = vperm.slane %v599, %v606
        %v608 = vrot.slane %v571, 4
        %v609 = vsel %vm412, %v608, %v559
        %v610 = vrot.slane %v559, 4
        %v611 = vsel %vm412, %v571, %v610
        %v613 = vunpack.c.l.s4 1934713408
        %v614 = vunpack.c.0.s8 %v613
        %v615 = vperm.slane %v609, %v614
        %v617 = vunpack.c.l.s4 1934713408
        %v618 = vunpack.c.0.s8 %v617
        %v619 = vperm.slane %v611, %v618
        %v620 = vrot.slane %v603, 4
        %v621 = vsel %vm412, %v620, %v579
        %v622 = vrot.slane %v579, 4
        %v623 = vsel %vm412, %v603, %v622
        %v624 = vrot.slane %v607, 4
        %v625 = vsel %vm412, %v624, %v583
        %v626 = vrot.slane %v583, 4
        %v627 = vsel %vm412, %v607, %v626
        %v628 = vrot.slane %v615, 4
        %v629 = vsel %vm412, %v628, %v591
        %v630 = vrot.slane %v591, 4
        %v631 = vsel %vm412, %v615, %v630
        %v632 = vrot.slane %v619, 4
        %v633 = vsel %vm412, %v632, %v595
        %v634 = vrot.slane %v595, 4
        %v635 = vsel %vm412, %v619, %v634
        %v636 = vrot.slane %v394, 4
        %v637 = vsel %vm412, %v636, %v388
        %v638 = vrot.slane %v388, 4
        %v639 = vsel %vm412, %v394, %v638
        %v641 = vunpack.c.l.s4 1983009808
        %v642 = vunpack.c.0.s8 %v641
        %v643 = vperm.slane %v637, %v642
        %v645 = vunpack.c.l.s4 1983009808
        %v646 = vunpack.c.0.s8 %v645
        %v647 = vperm.slane %v639, %v646
        %v648 = vrot.slane %v397, 4
        %v649 = vsel %vm412, %v648, %v391
        %v650 = vrot.slane %v391, 4
        %v651 = vsel %vm412, %v397, %v650
        %v653 = vunpack.c.l.s4 1983009808
        %v654 = vunpack.c.0.s8 %v653
        %v655 = vperm.slane %v649, %v654
        %v657 = vunpack.c.l.s4 1983009808
        %v658 = vunpack.c.0.s8 %v657
        %v659 = vperm.slane %v651, %v658
        %v660 = vrot.slane %v406, 4
        %v661 = vsel %vm412, %v660, %v400
        %v662 = vrot.slane %v400, 4
        %v663 = vsel %vm412, %v406, %v662
        %v665 = vunpack.c.l.s4 1983009808
        %v666 = vunpack.c.0.s8 %v665
        %v667 = vperm.slane %v661, %v666
        %v669 = vunpack.c.l.s4 1983009808
        %v670 = vunpack.c.0.s8 %v669
        %v671 = vperm.slane %v663, %v670
        %v672 = vrot.slane %v409, 4
        %v673 = vsel %vm412, %v672, %v403
        %v674 = vrot.slane %v403, 4
        %v675 = vsel %vm412, %v409, %v674
        %v677 = vunpack.c.l.s4 1983009808
        %v678 = vunpack.c.0.s8 %v677
        %v679 = vperm.slane %v673, %v678
        %v681 = vunpack.c.l.s4 1983009808
        %v682 = vunpack.c.0.s8 %v681
        %v683 = vperm.slane %v675, %v682
        %v684 = vrot.slane %v655, 4
        %v685 = vsel %vm412, %v684, %v643
        %v686 = vrot.slane %v643, 4
        %v687 = vsel %vm412, %v655, %v686
        %v689 = vunpack.c.l.s4 1934713408
        %v690 = vunpack.c.0.s8 %v689
        %v691 = vperm.slane %v685, %v690
        %v693 = vunpack.c.l.s4 1934713408
        %v694 = vunpack.c.0.s8 %v693
        %v695 = vperm.slane %v687, %v694
        %v696 = vrot.slane %v659, 4
        %v697 = vsel %vm412, %v696, %v647
        %v698 = vrot.slane %v647, 4
        %v699 = vsel %vm412, %v659, %v698
        %v701 = vunpack.c.l.s4 1934713408
        %v702 = vunpack.c.0.s8 %v701
        %v703 = vperm.slane %v697, %v702
        %v705 = vunpack.c.l.s4 1934713408
        %v706 = vunpack.c.0.s8 %v705
        %v707 = vperm.slane %v699, %v706
        %v708 = vrot.slane %v679, 4
        %v709 = vsel %vm412, %v708, %v667
        %v710 = vrot.slane %v667, 4
        %v711 = vsel %vm412, %v679, %v710
        %v713 = vunpack.c.l.s4 1934713408
        %v714 = vunpack.c.0.s8 %v713
        %v715 = vperm.slane %v709, %v714
        %v717 = vunpack.c.l.s4 1934713408
        %v718 = vunpack.c.0.s8 %v717
        %v719 = vperm.slane %v711, %v718
        %v720 = vrot.slane %v683, 4
        %v721 = vsel %vm412, %v720, %v671
        %v722 = vrot.slane %v671, 4
        %v723 = vsel %vm412, %v683, %v722
        %v725 = vunpack.c.l.s4 1934713408
        %v726 = vunpack.c.0.s8 %v725
        %v727 = vperm.slane %v721, %v726
        %v729 = vunpack.c.l.s4 1934713408
        %v730 = vunpack.c.0.s8 %v729
        %v731 = vperm.slane %v723, %v730
        %v732 = vrot.slane %v715, 4
        %v733 = vsel %vm412, %v732, %v691
        %v734 = vrot.slane %v691, 4
        %v735 = vsel %vm412, %v715, %v734
        %v736 = vrot.slane %v719, 4
        %v737 = vsel %vm412, %v736, %v695
        %v738 = vrot.slane %v695, 4
        %v739 = vsel %vm412, %v719, %v738
        %v740 = vrot.slane %v727, 4
        %v741 = vsel %vm412, %v740, %v703
        %v742 = vrot.slane %v703, 4
        %v743 = vsel %vm412, %v727, %v742
        %v744 = vrot.slane %v731, 4
        %v745 = vsel %vm412, %v744, %v707
        %v746 = vrot.slane %v707, 4
        %v747 = vsel %vm412, %v731, %v746
        %v748 = vrot.slane %v513, 4
        %v749 = vsel %vm412, %v748, %v509
        %v750 = vrot.slane %v509, 4
        %v751 = vsel %vm412, %v513, %v750
        %v753 = vunpack.c.l.s4 1983009808
        %v754 = vunpack.c.0.s8 %v753
        %v755 = vperm.slane %v749, %v754
        %v757 = vunpack.c.l.s4 1983009808
        %v758 = vunpack.c.0.s8 %v757
        %v759 = vperm.slane %v751, %v758
        %v760 = vrot.slane %v515, 4
        %v761 = vsel %vm412, %v760, %v511
        %v762 = vrot.slane %v511, 4
        %v763 = vsel %vm412, %v515, %v762
        %v765 = vunpack.c.l.s4 1983009808
        %v766 = vunpack.c.0.s8 %v765
        %v767 = vperm.slane %v761, %v766
        %v769 = vunpack.c.l.s4 1983009808
        %v770 = vunpack.c.0.s8 %v769
        %v771 = vperm.slane %v763, %v770
        %v772 = vrot.slane %v521, 4
        %v773 = vsel %vm412, %v772, %v517
        %v774 = vrot.slane %v517, 4
        %v775 = vsel %vm412, %v521, %v774
        %v777 = vunpack.c.l.s4 1983009808
        %v778 = vunpack.c.0.s8 %v777
        %v779 = vperm.slane %v773, %v778
        %v781 = vunpack.c.l.s4 1983009808
        %v782 = vunpack.c.0.s8 %v781
        %v783 = vperm.slane %v775, %v782
        %v784 = vrot.slane %v523, 4
        %v785 = vsel %vm412, %v784, %v519
        %v786 = vrot.slane %v519, 4
        %v787 = vsel %vm412, %v523, %v786
        %v789 = vunpack.c.l.s4 1983009808
        %v790 = vunpack.c.0.s8 %v789
        %v791 = vperm.slane %v785, %v790
        %v793 = vunpack.c.l.s4 1983009808
        %v794 = vunpack.c.0.s8 %v793
        %v795 = vperm.slane %v787, %v794
        %v796 = vrot.slane %v767, 4
        %v797 = vsel %vm412, %v796, %v755
        %v798 = vrot.slane %v755, 4
        %v799 = vsel %vm412, %v767, %v798
        %v801 = vunpack.c.l.s4 1934713408
        %v802 = vunpack.c.0.s8 %v801
        %v803 = vperm.slane %v797, %v802
        %v805 = vunpack.c.l.s4 1934713408
        %v806 = vunpack.c.0.s8 %v805
        %v807 = vperm.slane %v799, %v806
        %v808 = vrot.slane %v771, 4
        %v809 = vsel %vm412, %v808, %v759
        %v810 = vrot.slane %v759, 4
        %v811 = vsel %vm412, %v771, %v810
        %v813 = vunpack.c.l.s4 1934713408
        %v814 = vunpack.c.0.s8 %v813
        %v815 = vperm.slane %v809, %v814
        %v817 = vunpack.c.l.s4 1934713408
        %v818 = vunpack.c.0.s8 %v817
        %v819 = vperm.slane %v811, %v818
        %v820 = vrot.slane %v791, 4
        %v821 = vsel %vm412, %v820, %v779
        %v822 = vrot.slane %v779, 4
        %v823 = vsel %vm412, %v791, %v822
        %v825 = vunpack.c.l.s4 1934713408
        %v826 = vunpack.c.0.s8 %v825
        %v827 = vperm.slane %v821, %v826
        %v829 = vunpack.c.l.s4 1934713408
        %v830 = vunpack.c.0.s8 %v829
        %v831 = vperm.slane %v823, %v830
        %v832 = vrot.slane %v795, 4
        %v833 = vsel %vm412, %v832, %v783
        %v834 = vrot.slane %v783, 4
        %v835 = vsel %vm412, %v795, %v834
        %v837 = vunpack.c.l.s4 1934713408
        %v838 = vunpack.c.0.s8 %v837
        %v839 = vperm.slane %v833, %v838
        %v841 = vunpack.c.l.s4 1934713408
        %v842 = vunpack.c.0.s8 %v841
        %v843 = vperm.slane %v835, %v842
        %v844 = vrot.slane %v827, 4
        %v845 = vsel %vm412, %v844, %v803
        %v846 = vrot.slane %v803, 4
        %v847 = vsel %vm412, %v827, %v846
        %v848 = vrot.slane %v831, 4
        %v849 = vsel %vm412, %v848, %v807
        %v850 = vrot.slane %v807, 4
        %v851 = vsel %vm412, %v831, %v850
        %v852 = vrot.slane %v839, 4
        %v853 = vsel %vm412, %v852, %v815
        %v854 = vrot.slane %v815, 4
        %v855 = vsel %vm412, %v839, %v854
        %v856 = vrot.slane %v843, 4
        %v857 = vsel %vm412, %v856, %v819
        %v858 = vrot.slane %v819, 4
        %v859 = vsel %vm412, %v843, %v858
        %v860 = vrot.slane %v625, 4
        %v861 = vsel %vm412, %v860, %v621
        %v862 = vrot.slane %v621, 4
        %v863 = vsel %vm412, %v625, %v862
        %v865 = vunpack.c.l.s4 1983009808
        %v866 = vunpack.c.0.s8 %v865
        %v867 = vperm.slane %v861, %v866
        %v869 = vunpack.c.l.s4 1983009808
        %v870 = vunpack.c.0.s8 %v869
        %v871 = vperm.slane %v863, %v870
        %v872 = vrot.slane %v627, 4
        %v873 = vsel %vm412, %v872, %v623
        %v874 = vrot.slane %v623, 4
        %v875 = vsel %vm412, %v627, %v874
        %v877 = vunpack.c.l.s4 1983009808
        %v878 = vunpack.c.0.s8 %v877
        %v879 = vperm.slane %v873, %v878
        %v881 = vunpack.c.l.s4 1983009808
        %v882 = vunpack.c.0.s8 %v881
        %v883 = vperm.slane %v875, %v882
        %v884 = vrot.slane %v633, 4
        %v885 = vsel %vm412, %v884, %v629
        %v886 = vrot.slane %v629, 4
        %v887 = vsel %vm412, %v633, %v886
        %v889 = vunpack.c.l.s4 1983009808
        %v890 = vunpack.c.0.s8 %v889
        %v891 = vperm.slane %v885, %v890
        %v893 = vunpack.c.l.s4 1983009808
        %v894 = vunpack.c.0.s8 %v893
        %v895 = vperm.slane %v887, %v894
        %v896 = vrot.slane %v635, 4
        %v897 = vsel %vm412, %v896, %v631
        %v898 = vrot.slane %v631, 4
        %v899 = vsel %vm412, %v635, %v898
        %v901 = vunpack.c.l.s4 1983009808
        %v902 = vunpack.c.0.s8 %v901
        %v903 = vperm.slane %v897, %v902
        %v905 = vunpack.c.l.s4 1983009808
        %v906 = vunpack.c.0.s8 %v905
        %v907 = vperm.slane %v899, %v906
        %v908 = vrot.slane %v879, 4
        %v909 = vsel %vm412, %v908, %v867
        %v910 = vrot.slane %v867, 4
        %v911 = vsel %vm412, %v879, %v910
        %v913 = vunpack.c.l.s4 1934713408
        %v914 = vunpack.c.0.s8 %v913
        %v915 = vperm.slane %v909, %v914
        %v917 = vunpack.c.l.s4 1934713408
        %v918 = vunpack.c.0.s8 %v917
        %v919 = vperm.slane %v911, %v918
        %v920 = vrot.slane %v883, 4
        %v921 = vsel %vm412, %v920, %v871
        %v922 = vrot.slane %v871, 4
        %v923 = vsel %vm412, %v883, %v922
        %v925 = vunpack.c.l.s4 1934713408
        %v926 = vunpack.c.0.s8 %v925
        %v927 = vperm.slane %v921, %v926
        %v929 = vunpack.c.l.s4 1934713408
        %v930 = vunpack.c.0.s8 %v929
        %v931 = vperm.slane %v923, %v930
        %v932 = vrot.slane %v903, 4
        %v933 = vsel %vm412, %v932, %v891
        %v934 = vrot.slane %v891, 4
        %v935 = vsel %vm412, %v903, %v934
        %v937 = vunpack.c.l.s4 1934713408
        %v938 = vunpack.c.0.s8 %v937
        %v939 = vperm.slane %v933, %v938
        %v941 = vunpack.c.l.s4 1934713408
        %v942 = vunpack.c.0.s8 %v941
        %v943 = vperm.slane %v935, %v942
        %v944 = vrot.slane %v907, 4
        %v945 = vsel %vm412, %v944, %v895
        %v946 = vrot.slane %v895, 4
        %v947 = vsel %vm412, %v907, %v946
        %v949 = vunpack.c.l.s4 1934713408
        %v950 = vunpack.c.0.s8 %v949
        %v951 = vperm.slane %v945, %v950
        %v953 = vunpack.c.l.s4 1934713408
        %v954 = vunpack.c.0.s8 %v953
        %v955 = vperm.slane %v947, %v954
        %v956 = vrot.slane %v939, 4
        %v957 = vsel %vm412, %v956, %v915
        %v958 = vrot.slane %v915, 4
        %v959 = vsel %vm412, %v939, %v958
        %v960 = vrot.slane %v943, 4
        %v961 = vsel %vm412, %v960, %v919
        %v962 = vrot.slane %v919, 4
        %v963 = vsel %vm412, %v943, %v962
        %v964 = vrot.slane %v951, 4
        %v965 = vsel %vm412, %v964, %v927
        %v966 = vrot.slane %v927, 4
        %v967 = vsel %vm412, %v951, %v966
        %v968 = vrot.slane %v955, 4
        %v969 = vsel %vm412, %v968, %v931
        %v970 = vrot.slane %v931, 4
        %v971 = vsel %vm412, %v955, %v970
        %v972 = vrot.slane %v737, 4
        %v973 = vsel %vm412, %v972, %v733
        %v974 = vrot.slane %v733, 4
        %v975 = vsel %vm412, %v737, %v974
        %v977 = vunpack.c.l.s4 1983009808
        %v978 = vunpack.c.0.s8 %v977
        %v979 = vperm.slane %v973, %v978
        %v981 = vunpack.c.l.s4 1983009808
        %v982 = vunpack.c.0.s8 %v981
        %v983 = vperm.slane %v975, %v982
        %v984 = vrot.slane %v739, 4
        %v985 = vsel %vm412, %v984, %v735
        %v986 = vrot.slane %v735, 4
        %v987 = vsel %vm412, %v739, %v986
        %v989 = vunpack.c.l.s4 1983009808
        %v990 = vunpack.c.0.s8 %v989
        %v991 = vperm.slane %v985, %v990
        %v993 = vunpack.c.l.s4 1983009808
        %v994 = vunpack.c.0.s8 %v993
        %v995 = vperm.slane %v987, %v994
        %v996 = vrot.slane %v745, 4
        %v997 = vsel %vm412, %v996, %v741
        %v998 = vrot.slane %v741, 4
        %v999 = vsel %vm412, %v745, %v998
        %v1001 = vunpack.c.l.s4 1983009808
        %v1002 = vunpack.c.0.s8 %v1001
        %v1003 = vperm.slane %v997, %v1002
        %v1005 = vunpack.c.l.s4 1983009808
        %v1006 = vunpack.c.0.s8 %v1005
        %v1007 = vperm.slane %v999, %v1006
        %v1008 = vrot.slane %v747, 4
        %v1009 = vsel %vm412, %v1008, %v743
        %v1010 = vrot.slane %v743, 4
        %v1011 = vsel %vm412, %v747, %v1010
        %v1013 = vunpack.c.l.s4 1983009808
        %v1014 = vunpack.c.0.s8 %v1013
        %v1015 = vperm.slane %v1009, %v1014
        %v1017 = vunpack.c.l.s4 1983009808
        %v1018 = vunpack.c.0.s8 %v1017
        %v1019 = vperm.slane %v1011, %v1018
        %v1020 = vrot.slane %v991, 4
        %v1021 = vsel %vm412, %v1020, %v979
        %v1022 = vrot.slane %v979, 4
        %v1023 = vsel %vm412, %v991, %v1022
        %v1025 = vunpack.c.l.s4 1934713408
        %v1026 = vunpack.c.0.s8 %v1025
        %v1027 = vperm.slane %v1021, %v1026
        %v1029 = vunpack.c.l.s4 1934713408
        %v1030 = vunpack.c.0.s8 %v1029
        %v1031 = vperm.slane %v1023, %v1030
        %v1032 = vrot.slane %v995, 4
        %v1033 = vsel %vm412, %v1032, %v983
        %v1034 = vrot.slane %v983, 4
        %v1035 = vsel %vm412, %v995, %v1034
        %v1037 = vunpack.c.l.s4 1934713408
        %v1038 = vunpack.c.0.s8 %v1037
        %v1039 = vperm.slane %v1033, %v1038
        %v1041 = vunpack.c.l.s4 1934713408
        %v1042 = vunpack.c.0.s8 %v1041
        %v1043 = vperm.slane %v1035, %v1042
        %v1044 = vrot.slane %v1015, 4
        %v1045 = vsel %vm412, %v1044, %v1003
        %v1046 = vrot.slane %v1003, 4
        %v1047 = vsel %vm412, %v1015, %v1046
        %v1049 = vunpack.c.l.s4 1934713408
        %v1050 = vunpack.c.0.s8 %v1049
        %v1051 = vperm.slane %v1045, %v1050
        %v1053 = vunpack.c.l.s4 1934713408
        %v1054 = vunpack.c.0.s8 %v1053
        %v1055 = vperm.slane %v1047, %v1054
        %v1056 = vrot.slane %v1019, 4
        %v1057 = vsel %vm412, %v1056, %v1007
        %v1058 = vrot.slane %v1007, 4
        %v1059 = vsel %vm412, %v1019, %v1058
        %v1061 = vunpack.c.l.s4 1934713408
        %v1062 = vunpack.c.0.s8 %v1061
        %v1063 = vperm.slane %v1057, %v1062
        %v1065 = vunpack.c.l.s4 1934713408
        %v1066 = vunpack.c.0.s8 %v1065
        %v1067 = vperm.slane %v1059, %v1066
        %v1068 = vrot.slane %v1051, 4
        %v1069 = vsel %vm412, %v1068, %v1027
        %v1070 = vrot.slane %v1027, 4
        %v1071 = vsel %vm412, %v1051, %v1070
        %v1072 = vrot.slane %v1055, 4
        %v1073 = vsel %vm412, %v1072, %v1031
        %v1074 = vrot.slane %v1031, 4
        %v1075 = vsel %vm412, %v1055, %v1074
        %v1076 = vrot.slane %v1063, 4
        %v1077 = vsel %vm412, %v1076, %v1039
        %v1078 = vrot.slane %v1039, 4
        %v1079 = vsel %vm412, %v1063, %v1078
        %v1080 = vrot.slane %v1067, 4
        %v1081 = vsel %vm412, %v1080, %v1043
        %v1082 = vrot.slane %v1043, 4
        %v1083 = vsel %vm412, %v1067, %v1082
        %vm1084 = vcmask 31744
        %v1086 = vsel %vm1084, %v845, 0
        %v1089 = vsel %vm1084, %v957, 0
        %1091 = vmatpush.xpose.msra.mxu0 0.0
        %1092 = vmatpush.xpose.msra.mxu0 0.0
        %1093 = vmatpush.xpose.msra.mxu0 0.0
        %1094 = vmatpush.xpose.msra.mxu0 0.0
        %1095 = vmatpush.xpose.msra.mxu0 0.0
        %1096 = vmatpush.xpose.msra.mxu0 0.0
        %1097 = vmatpush.xpose.msra.mxu0 0.0
        %1098 = vmatpush.xpose.msra.mxu0 0.0
        %1099 = vmatpush.xpose.msra.mxu0 0.0
        %1100 = vmatpush.xpose.msra.mxu0 0.0
        %1101 = vmatpush.xpose.msra.mxu0 0.0
        %1102 = vmatpush.xpose.msra.mxu0 0.0
        %1103 = vmatpush.xpose.msra.mxu0 0.0
        %1104 = vmatpush.xpose.msra.mxu0 0.0
        %1105 = vmatpush.xpose.msra.mxu0 0.0
        %1106 = vmatpush.xpose.msra.mxu0 %v1089
        %1107 = vmatmul.f32.gmra.mxu0 %v1086
        %v1108 = vpop.f32.mrf.mxu0
        %v1109 = vadd.f32 0.0, %v1108
        %1110 = vdwg.mxu0
        %v1112 = vsel %vm1084, %v847, 0
        %v1115 = vsel %vm1084, %v959, 0
        %1117 = vmatpush.xpose.msra.mxu0 0.0
        %1118 = vmatpush.xpose.msra.mxu0 0.0
        %1119 = vmatpush.xpose.msra.mxu0 0.0
        %1120 = vmatpush.xpose.msra.mxu0 0.0
        %1121 = vmatpush.xpose.msra.mxu0 0.0
        %1122 = vmatpush.xpose.msra.mxu0 0.0
        %1123 = vmatpush.xpose.msra.mxu0 0.0
        %1124 = vmatpush.xpose.msra.mxu0 0.0
        %1125 = vmatpush.xpose.msra.mxu0 0.0
        %1126 = vmatpush.xpose.msra.mxu0 0.0
        %1127 = vmatpush.xpose.msra.mxu0 0.0
        %1128 = vmatpush.xpose.msra.mxu0 0.0
        %1129 = vmatpush.xpose.msra.mxu0 0.0
        %1130 = vmatpush.xpose.msra.mxu0 0.0
        %1131 = vmatpush.xpose.msra.mxu0 0.0
        %1132 = vmatpush.xpose.msra.mxu0 %v1115
        %1133 = vmatmul.f32.gmra.mxu0 %v1112
        %v1134 = vpop.f32.mrf.mxu0
        %v1135 = vadd.f32 0.0, %v1134
        %1136 = vdwg.mxu0
        %v1138 = vsel %vm1084, %v849, 0
        %v1141 = vsel %vm1084, %v961, 0
        %1143 = vmatpush.xpose.msra.mxu0 0.0
        %1144 = vmatpush.xpose.msra.mxu0 0.0
        %1145 = vmatpush.xpose.msra.mxu0 0.0
        %1146 = vmatpush.xpose.msra.mxu0 0.0
        %1147 = vmatpush.xpose.msra.mxu0 0.0
        %1148 = vmatpush.xpose.msra.mxu0 0.0
        %1149 = vmatpush.xpose.msra.mxu0 0.0
        %1150 = vmatpush.xpose.msra.mxu0 0.0
        %1151 = vmatpush.xpose.msra.mxu0 0.0
        %1152 = vmatpush.xpose.msra.mxu0 0.0
        %1153 = vmatpush.xpose.msra.mxu0 0.0
        %1154 = vmatpush.xpose.msra.mxu0 0.0
        %1155 = vmatpush.xpose.msra.mxu0 0.0
        %1156 = vmatpush.xpose.msra.mxu0 0.0
        %1157 = vmatpush.xpose.msra.mxu0 0.0
        %1158 = vmatpush.xpose.msra.mxu0 %v1141
        %1159 = vmatmul.f32.gmra.mxu0 %v1138
        %v1160 = vpop.f32.mrf.mxu0
        %v1161 = vadd.f32 0.0, %v1160
        %1162 = vdwg.mxu0
        %v1164 = vsel %vm1084, %v851, 0
        %v1167 = vsel %vm1084, %v963, 0
        %1169 = vmatpush.xpose.msra.mxu0 0.0
        %1170 = vmatpush.xpose.msra.mxu0 0.0
        %1171 = vmatpush.xpose.msra.mxu0 0.0
        %1172 = vmatpush.xpose.msra.mxu0 0.0
        %1173 = vmatpush.xpose.msra.mxu0 0.0
        %1174 = vmatpush.xpose.msra.mxu0 0.0
        %1175 = vmatpush.xpose.msra.mxu0 0.0
        %1176 = vmatpush.xpose.msra.mxu0 0.0
        %1177 = vmatpush.xpose.msra.mxu0 0.0
        %1178 = vmatpush.xpose.msra.mxu0 0.0
        %1179 = vmatpush.xpose.msra.mxu0 0.0
        %1180 = vmatpush.xpose.msra.mxu0 0.0
        %1181 = vmatpush.xpose.msra.mxu0 0.0
        %1182 = vmatpush.xpose.msra.mxu0 0.0
        %1183 = vmatpush.xpose.msra.mxu0 0.0
        %1184 = vmatpush.xpose.msra.mxu0 %v1167
        %1185 = vmatmul.f32.gmra.mxu0 %v1164
        %v1186 = vpop.f32.mrf.mxu0
        %v1187 = vadd.f32 0.0, %v1186
        %1188 = vdwg.mxu0
        %v1190 = vsel %vm1084, %v853, 0
        %v1193 = vsel %vm1084, %v965, 0
        %1195 = vmatpush.xpose.msra.mxu0 0.0
        %1196 = vmatpush.xpose.msra.mxu0 0.0
        %1197 = vmatpush.xpose.msra.mxu0 0.0
        %1198 = vmatpush.xpose.msra.mxu0 0.0
        %1199 = vmatpush.xpose.msra.mxu0 0.0
        %1200 = vmatpush.xpose.msra.mxu0 0.0
        %1201 = vmatpush.xpose.msra.mxu0 0.0
        %1202 = vmatpush.xpose.msra.mxu0 0.0
        %1203 = vmatpush.xpose.msra.mxu0 0.0
        %1204 = vmatpush.xpose.msra.mxu0 0.0
        %1205 = vmatpush.xpose.msra.mxu0 0.0
        %1206 = vmatpush.xpose.msra.mxu0 0.0
        %1207 = vmatpush.xpose.msra.mxu0 0.0
        %1208 = vmatpush.xpose.msra.mxu0 0.0
        %1209 = vmatpush.xpose.msra.mxu0 0.0
        %1210 = vmatpush.xpose.msra.mxu0 %v1193
        %1211 = vmatmul.f32.gmra.mxu0 %v1190
        %v1212 = vpop.f32.mrf.mxu0
        %v1213 = vadd.f32 0.0, %v1212
        %1214 = vdwg.mxu0
        %v1216 = vsel %vm1084, %v855, 0
        %v1219 = vsel %vm1084, %v967, 0
        %1221 = vmatpush.xpose.msra.mxu0 0.0
        %1222 = vmatpush.xpose.msra.mxu0 0.0
        %1223 = vmatpush.xpose.msra.mxu0 0.0
        %1224 = vmatpush.xpose.msra.mxu0 0.0
        %1225 = vmatpush.xpose.msra.mxu0 0.0
        %1226 = vmatpush.xpose.msra.mxu0 0.0
        %1227 = vmatpush.xpose.msra.mxu0 0.0
        %1228 = vmatpush.xpose.msra.mxu0 0.0
        %1229 = vmatpush.xpose.msra.mxu0 0.0
        %1230 = vmatpush.xpose.msra.mxu0 0.0
        %1231 = vmatpush.xpose.msra.mxu0 0.0
        %1232 = vmatpush.xpose.msra.mxu0 0.0
        %1233 = vmatpush.xpose.msra.mxu0 0.0
        %1234 = vmatpush.xpose.msra.mxu0 0.0
        %1235 = vmatpush.xpose.msra.mxu0 0.0
        %1236 = vmatpush.xpose.msra.mxu0 %v1219
        %1237 = vmatmul.f32.gmra.mxu0 %v1216
        %v1238 = vpop.f32.mrf.mxu0
        %v1239 = vadd.f32 0.0, %v1238
        %1240 = vdwg.mxu0
        %v1242 = vsel %vm1084, %v857, 0
        %v1245 = vsel %vm1084, %v969, 0
        %1247 = vmatpush.xpose.msra.mxu0 0.0
        %1248 = vmatpush.xpose.msra.mxu0 0.0
        %1249 = vmatpush.xpose.msra.mxu0 0.0
        %1250 = vmatpush.xpose.msra.mxu0 0.0
        %1251 = vmatpush.xpose.msra.mxu0 0.0
        %1252 = vmatpush.xpose.msra.mxu0 0.0
        %1253 = vmatpush.xpose.msra.mxu0 0.0
        %1254 = vmatpush.xpose.msra.mxu0 0.0
        %1255 = vmatpush.xpose.msra.mxu0 0.0
        %1256 = vmatpush.xpose.msra.mxu0 0.0
        %1257 = vmatpush.xpose.msra.mxu0 0.0
        %1258 = vmatpush.xpose.msra.mxu0 0.0
        %1259 = vmatpush.xpose.msra.mxu0 0.0
        %1260 = vmatpush.xpose.msra.mxu0 0.0
        %1261 = vmatpush.xpose.msra.mxu0 0.0
        %1262 = vmatpush.xpose.msra.mxu0 %v1245
        %1263 = vmatmul.f32.gmra.mxu0 %v1242
        %v1264 = vpop.f32.mrf.mxu0
        %v1265 = vadd.f32 0.0, %v1264
        %1266 = vdwg.mxu0
        %v1268 = vsel %vm1084, %v859, 0
        %v1271 = vsel %vm1084, %v971, 0
        %1273 = vmatpush.xpose.msra.mxu0 0.0
        %1274 = vmatpush.xpose.msra.mxu0 0.0
        %1275 = vmatpush.xpose.msra.mxu0 0.0
        %1276 = vmatpush.xpose.msra.mxu0 0.0
        %1277 = vmatpush.xpose.msra.mxu0 0.0
        %1278 = vmatpush.xpose.msra.mxu0 0.0
        %1279 = vmatpush.xpose.msra.mxu0 0.0
        %1280 = vmatpush.xpose.msra.mxu0 0.0
        %1281 = vmatpush.xpose.msra.mxu0 0.0
        %1282 = vmatpush.xpose.msra.mxu0 0.0
        %1283 = vmatpush.xpose.msra.mxu0 0.0
        %1284 = vmatpush.xpose.msra.mxu0 0.0
        %1285 = vmatpush.xpose.msra.mxu0 0.0
        %1286 = vmatpush.xpose.msra.mxu0 0.0
        %1287 = vmatpush.xpose.msra.mxu0 0.0
        %1288 = vmatpush.xpose.msra.mxu0 %v1271
        %1289 = vmatmul.f32.gmra.mxu0 %v1268
        %v1290 = vpop.f32.mrf.mxu0
        %v1291 = vadd.f32 0.0, %v1290
        %1292 = vdwg.mxu0
        %v1293 = vld [vmem:[%s311] sm:$0xff]
        %vm1294 = vcmp.gt.f32.partialorder %v1293, 0.5
        %v1295 = vld [vmem:[%s307] sm:$0x1]
        %vm1296 = vcmp.gt.f32.partialorder %v1295, 0.5
        %v1297 = vsel %vm1294, 1, 0
        %1298 = vset.pattern.permute.xlu0 0
        %1299 = vperm.xlu0 %1298, %v1297
        %v1300 = vpop.permute.xlu0 %1299
        %vm1301 = vcmp.eq.s32.totalorder %v1300, 1
        %v1302 = vsel %vm1296, 1, 0
        %v1303 = vperm.slane %v1302, 0
        %vm1304 = vcmp.eq.s32.totalorder %v1303, 1
        %vm1305 = vmand %vm1301, %vm1304
        %v1306 = vsel %vm1305, 1, 0
        %vm1307 = vcmp.eq.s32.totalorder %v1306, 1
        %v1308 = vsel %vm1307, %v1109, -1e+30
        %v1309 = vsel %vm1307, %v1135, -1e+30
        %v1310 = vsel %vm1307, %v1161, -1e+30
        %v1311 = vsel %vm1307, %v1187, -1e+30
        %v1312 = vsel %vm1307, %v1213, -1e+30
        %v1313 = vsel %vm1307, %v1239, -1e+30
        %v1314 = vsel %vm1307, %v1265, -1e+30
        %v1315 = vsel %vm1307, %v1291, -1e+30
        %vm1316 = vcmask 64512
        %v1317 = vsel %vm1316, %v1308, -inf
        %1318 = vmax.xlane.f32.xlu0 %v1317
        %v1319 = vpop.xlane.xlu0 %1318
        %v1320 = vsel %vm1316, %v1309, -inf
        %1321 = vmax.xlane.f32.xlu0 %v1320
        %v1322 = vpop.xlane.xlu0 %1321
        %v1323 = vsel %vm1316, %v1310, -inf
        %1324 = vmax.xlane.f32.xlu0 %v1323
        %v1325 = vpop.xlane.xlu0 %1324
        %v1326 = vsel %vm1316, %v1311, -inf
        %1327 = vmax.xlane.f32.xlu0 %v1326
        %v1328 = vpop.xlane.xlu0 %1327
        %v1329 = vsel %vm1316, %v1312, -inf
        %1330 = vmax.xlane.f32.xlu0 %v1329
        %v1331 = vpop.xlane.xlu0 %1330
        %v1332 = vsel %vm1316, %v1313, -inf
        %1333 = vmax.xlane.f32.xlu0 %v1332
        %v1334 = vpop.xlane.xlu0 %1333
        %v1335 = vsel %vm1316, %v1314, -inf
        %1336 = vmax.xlane.f32.xlu0 %v1335
        %v1337 = vpop.xlane.xlu0 %1336
        %v1338 = vsel %vm1316, %v1315, -inf
        %1339 = vmax.xlane.f32.xlu0 %v1338
        %v1340 = vpop.xlane.xlu0 %1339
        %v1341 = vsub.f32 %v1308, %v1319
        %v1342 = vsub.f32 %v1309, %v1322
        %v1343 = vsub.f32 %v1310, %v1325
        %v1344 = vsub.f32 %v1311, %v1328
        %v1345 = vsub.f32 %v1312, %v1331
        %v1346 = vsub.f32 %v1313, %v1334
        %v1347 = vsub.f32 %v1314, %v1337
        %v1348 = vsub.f32 %v1315, %v1340
        %v1349 = vmul.f32 %v1341, 1.442695
        %v1350 = vpow.pop %v1349
        %v1351 = vmul.f32 %v1342, 1.442695
        %v1352 = vpow.pop %v1351
        %v1353 = vmul.f32 %v1343, 1.442695
        %v1354 = vpow.pop %v1353
        %v1355 = vmul.f32 %v1344, 1.442695
        %v1356 = vpow.pop %v1355
        %v1357 = vmul.f32 %v1345, 1.442695
        %v1358 = vpow.pop %v1357
        %v1359 = vmul.f32 %v1346, 1.442695
        %v1360 = vpow.pop %v1359
        %v1361 = vmul.f32 %v1347, 1.442695
        %v1362 = vpow.pop %v1361
        %v1363 = vmul.f32 %v1348, 1.442695
        %v1364 = vpow.pop %v1363
        %v1365 = vsel %vm1316, %v1350, 0.0
        %1366 = vadd.xlane.f32.xlu0 %v1365
        %v1367 = vpop.xlane.xlu0 %1366
        %v1368 = vsel %vm1316, %v1352, 0.0
        %1369 = vadd.xlane.f32.xlu0 %v1368
        %v1370 = vpop.xlane.xlu0 %1369
        %v1371 = vsel %vm1316, %v1354, 0.0
        %1372 = vadd.xlane.f32.xlu0 %v1371
        %v1373 = vpop.xlane.xlu0 %1372
        %v1374 = vsel %vm1316, %v1356, 0.0
        %1375 = vadd.xlane.f32.xlu0 %v1374
        %v1376 = vpop.xlane.xlu0 %1375
        %v1377 = vsel %vm1316, %v1358, 0.0
        %1378 = vadd.xlane.f32.xlu0 %v1377
        %v1379 = vpop.xlane.xlu0 %1378
        %v1380 = vsel %vm1316, %v1360, 0.0
        %1381 = vadd.xlane.f32.xlu0 %v1380
        %v1382 = vpop.xlane.xlu0 %1381
        %v1383 = vsel %vm1316, %v1362, 0.0
        %1384 = vadd.xlane.f32.xlu0 %v1383
        %v1385 = vpop.xlane.xlu0 %1384
        %v1386 = vsel %vm1316, %v1364, 0.0
        %1387 = vadd.xlane.f32.xlu0 %v1386
        %v1388 = vpop.xlane.xlu0 %1387
        %v1389 = vrcp.pop %v1367
        %v1390 = vmul.f32 %v1367, %v1389
        %v1391 = vsub.f32 1.0, %v1390
        %v1392 = vmul.f32 %v1389, %v1391
        %v1393 = vadd.f32 %v1389, %v1392
        %vm1394 = vweird.f32 %v1367
        %vm1395 = vweird.f32 %v1389
        %vm1396 = vmor %vm1394, %vm1395
        %v1397 = vsel %vm1396, %v1389, %v1393
        %v1398 = vand.u32 2147483647, %v1367
        %vm1399 = vcmp.eq.f32.partialorder %v1398, 8.507059e+37
        %v1400 = vand.u32 %v1367, 2147483648
        %v1401 = vor.u32 1.1754944e-38, %v1400
        %v1402 = vsel %vm1399, %v1401, %v1397
        %v1403 = vmul.f32 %v1350, %v1402
        %v1404 = vrcp.pop %v1370
        %v1405 = vmul.f32 %v1370, %v1404
        %v1406 = vsub.f32 1.0, %v1405
        %v1407 = vmul.f32 %v1404, %v1406
        %v1408 = vadd.f32 %v1404, %v1407
        %vm1409 = vweird.f32 %v1370
        %vm1410 = vweird.f32 %v1404
        %vm1411 = vmor %vm1409, %vm1410
        %v1412 = vsel %vm1411, %v1404, %v1408
        %v1413 = vand.u32 2147483647, %v1370
        %vm1414 = vcmp.eq.f32.partialorder %v1413, 8.507059e+37
        %v1415 = vand.u32 %v1370, 2147483648
        %v1416 = vor.u32 1.1754944e-38, %v1415
        %v1417 = vsel %vm1414, %v1416, %v1412
        %v1418 = vmul.f32 %v1352, %v1417
        %v1419 = vrcp.pop %v1373
        %v1420 = vmul.f32 %v1373, %v1419
        %v1421 = vsub.f32 1.0, %v1420
        %v1422 = vmul.f32 %v1419, %v1421
        %v1423 = vadd.f32 %v1419, %v1422
        %vm1424 = vweird.f32 %v1373
        %vm1425 = vweird.f32 %v1419
        %vm1426 = vmor %vm1424, %vm1425
        %v1427 = vsel %vm1426, %v1419, %v1423
        %v1428 = vand.u32 2147483647, %v1373
        %vm1429 = vcmp.eq.f32.partialorder %v1428, 8.507059e+37
        %v1430 = vand.u32 %v1373, 2147483648
        %v1431 = vor.u32 1.1754944e-38, %v1430
        %v1432 = vsel %vm1429, %v1431, %v1427
        %v1433 = vmul.f32 %v1354, %v1432
        %v1434 = vrcp.pop %v1376
        %v1435 = vmul.f32 %v1376, %v1434
        %v1436 = vsub.f32 1.0, %v1435
        %v1437 = vmul.f32 %v1434, %v1436
        %v1438 = vadd.f32 %v1434, %v1437
        %vm1439 = vweird.f32 %v1376
        %vm1440 = vweird.f32 %v1434
        %vm1441 = vmor %vm1439, %vm1440
        %v1442 = vsel %vm1441, %v1434, %v1438
        %v1443 = vand.u32 2147483647, %v1376
        %vm1444 = vcmp.eq.f32.partialorder %v1443, 8.507059e+37
        %v1445 = vand.u32 %v1376, 2147483648
        %v1446 = vor.u32 1.1754944e-38, %v1445
        %v1447 = vsel %vm1444, %v1446, %v1442
        %v1448 = vmul.f32 %v1356, %v1447
        %v1449 = vrcp.pop %v1379
        %v1450 = vmul.f32 %v1379, %v1449
        %v1451 = vsub.f32 1.0, %v1450
        %v1452 = vmul.f32 %v1449, %v1451
        %v1453 = vadd.f32 %v1449, %v1452
        %vm1454 = vweird.f32 %v1379
        %vm1455 = vweird.f32 %v1449
        %vm1456 = vmor %vm1454, %vm1455
        %v1457 = vsel %vm1456, %v1449, %v1453
        %v1458 = vand.u32 2147483647, %v1379
        %vm1459 = vcmp.eq.f32.partialorder %v1458, 8.507059e+37
        %v1460 = vand.u32 %v1379, 2147483648
        %v1461 = vor.u32 1.1754944e-38, %v1460
        %v1462 = vsel %vm1459, %v1461, %v1457
        %v1463 = vmul.f32 %v1358, %v1462
        %v1464 = vrcp.pop %v1382
        %v1465 = vmul.f32 %v1382, %v1464
        %v1466 = vsub.f32 1.0, %v1465
        %v1467 = vmul.f32 %v1464, %v1466
        %v1468 = vadd.f32 %v1464, %v1467
        %vm1469 = vweird.f32 %v1382
        %vm1470 = vweird.f32 %v1464
        %vm1471 = vmor %vm1469, %vm1470
        %v1472 = vsel %vm1471, %v1464, %v1468
        %v1473 = vand.u32 2147483647, %v1382
        %vm1474 = vcmp.eq.f32.partialorder %v1473, 8.507059e+37
        %v1475 = vand.u32 %v1382, 2147483648
        %v1476 = vor.u32 1.1754944e-38, %v1475
        %v1477 = vsel %vm1474, %v1476, %v1472
        %v1478 = vmul.f32 %v1360, %v1477
        %v1479 = vrcp.pop %v1385
        %v1480 = vmul.f32 %v1385, %v1479
        %v1481 = vsub.f32 1.0, %v1480
        %v1482 = vmul.f32 %v1479, %v1481
        %v1483 = vadd.f32 %v1479, %v1482
        %vm1484 = vweird.f32 %v1385
        %vm1485 = vweird.f32 %v1479
        %vm1486 = vmor %vm1484, %vm1485
        %v1487 = vsel %vm1486, %v1479, %v1483
        %v1488 = vand.u32 2147483647, %v1385
        %vm1489 = vcmp.eq.f32.partialorder %v1488, 8.507059e+37
        %v1490 = vand.u32 %v1385, 2147483648
        %v1491 = vor.u32 1.1754944e-38, %v1490
        %v1492 = vsel %vm1489, %v1491, %v1487
        %v1493 = vmul.f32 %v1362, %v1492
        %v1494 = vrcp.pop %v1388
        %v1495 = vmul.f32 %v1388, %v1494
        %v1496 = vsub.f32 1.0, %v1495
        %v1497 = vmul.f32 %v1494, %v1496
        %v1498 = vadd.f32 %v1494, %v1497
        %vm1499 = vweird.f32 %v1388
        %vm1500 = vweird.f32 %v1494
        %vm1501 = vmor %vm1499, %vm1500
        %v1502 = vsel %vm1501, %v1494, %v1498
        %v1503 = vand.u32 2147483647, %v1388
        %vm1504 = vcmp.eq.f32.partialorder %v1503, 8.507059e+37
        %v1505 = vand.u32 %v1388, 2147483648
        %v1506 = vor.u32 1.1754944e-38, %v1505
        %v1507 = vsel %vm1504, %v1506, %v1502
        %v1508 = vmul.f32 %v1364, %v1507
        %v1510 = vsel %vm1316, %v1403, 0
        %1512 = vmatpush.msra.mxu0 0.0
        %1513 = vmatpush.msra.mxu0 0.0
        %1514 = vmatpush.msra.mxu0 0.0
        %1515 = vmatpush.msra.mxu0 0.0
        %1516 = vmatpush.msra.mxu0 0.0
        %1517 = vmatpush.msra.mxu0 0.0
        %1518 = vmatpush.msra.mxu0 0.0
        %1519 = vmatpush.msra.mxu0 0.0
        %1520 = vmatpush.msra.mxu0 0.0
        %1521 = vmatpush.msra.mxu0 0.0
        %1522 = vmatpush.msra.mxu0 0.0
        %1523 = vmatpush.msra.mxu0 0.0
        %1524 = vmatpush.msra.mxu0 0.0
        %1525 = vmatpush.msra.mxu0 0.0
        %1526 = vmatpush.msra.mxu0 0.0
        %1527 = vmatpush.msra.mxu0 %v1069
        %1528 = vmatmul.f32.gmra.mxu0 %v1510
        %v1529 = vpop.f32.mrf.mxu0
        %v1530 = vadd.f32 0.0, %v1529
        %1531 = vdwg.mxu0
        %v1533 = vsel %vm1316, %v1418, 0
        %1535 = vmatpush.msra.mxu0 0.0
        %1536 = vmatpush.msra.mxu0 0.0
        %1537 = vmatpush.msra.mxu0 0.0
        %1538 = vmatpush.msra.mxu0 0.0
        %1539 = vmatpush.msra.mxu0 0.0
        %1540 = vmatpush.msra.mxu0 0.0
        %1541 = vmatpush.msra.mxu0 0.0
        %1542 = vmatpush.msra.mxu0 0.0
        %1543 = vmatpush.msra.mxu0 0.0
        %1544 = vmatpush.msra.mxu0 0.0
        %1545 = vmatpush.msra.mxu0 0.0
        %1546 = vmatpush.msra.mxu0 0.0
        %1547 = vmatpush.msra.mxu0 0.0
        %1548 = vmatpush.msra.mxu0 0.0
        %1549 = vmatpush.msra.mxu0 0.0
        %1550 = vmatpush.msra.mxu0 %v1071
        %1551 = vmatmul.f32.gmra.mxu0 %v1533
        %v1552 = vpop.f32.mrf.mxu0
        %v1553 = vadd.f32 0.0, %v1552
        %1554 = vdwg.mxu0
        %v1556 = vsel %vm1316, %v1433, 0
        %1558 = vmatpush.msra.mxu0 0.0
        %1559 = vmatpush.msra.mxu0 0.0
        %1560 = vmatpush.msra.mxu0 0.0
        %1561 = vmatpush.msra.mxu0 0.0
        %1562 = vmatpush.msra.mxu0 0.0
        %1563 = vmatpush.msra.mxu0 0.0
        %1564 = vmatpush.msra.mxu0 0.0
        %1565 = vmatpush.msra.mxu0 0.0
        %1566 = vmatpush.msra.mxu0 0.0
        %1567 = vmatpush.msra.mxu0 0.0
        %1568 = vmatpush.msra.mxu0 0.0
        %1569 = vmatpush.msra.mxu0 0.0
        %1570 = vmatpush.msra.mxu0 0.0
        %1571 = vmatpush.msra.mxu0 0.0
        %1572 = vmatpush.msra.mxu0 0.0
        %1573 = vmatpush.msra.mxu0 %v1073
        %1574 = vmatmul.f32.gmra.mxu0 %v1556
        %v1575 = vpop.f32.mrf.mxu0
        %v1576 = vadd.f32 0.0, %v1575
        %1577 = vdwg.mxu0
        %v1579 = vsel %vm1316, %v1448, 0
        %1581 = vmatpush.msra.mxu0 0.0
        %1582 = vmatpush.msra.mxu0 0.0
        %1583 = vmatpush.msra.mxu0 0.0
        %1584 = vmatpush.msra.mxu0 0.0
        %1585 = vmatpush.msra.mxu0 0.0
        %1586 = vmatpush.msra.mxu0 0.0
        %1587 = vmatpush.msra.mxu0 0.0
        %1588 = vmatpush.msra.mxu0 0.0
        %1589 = vmatpush.msra.mxu0 0.0
        %1590 = vmatpush.msra.mxu0 0.0
        %1591 = vmatpush.msra.mxu0 0.0
        %1592 = vmatpush.msra.mxu0 0.0
        %1593 = vmatpush.msra.mxu0 0.0
        %1594 = vmatpush.msra.mxu0 0.0
        %1595 = vmatpush.msra.mxu0 0.0
        %1596 = vmatpush.msra.mxu0 %v1075
        %1597 = vmatmul.f32.gmra.mxu0 %v1579
        %v1598 = vpop.f32.mrf.mxu0
        %v1599 = vadd.f32 0.0, %v1598
        %1600 = vdwg.mxu0
        %v1602 = vsel %vm1316, %v1463, 0
        %1604 = vmatpush.msra.mxu0 0.0
        %1605 = vmatpush.msra.mxu0 0.0
        %1606 = vmatpush.msra.mxu0 0.0
        %1607 = vmatpush.msra.mxu0 0.0
        %1608 = vmatpush.msra.mxu0 0.0
        %1609 = vmatpush.msra.mxu0 0.0
        %1610 = vmatpush.msra.mxu0 0.0
        %1611 = vmatpush.msra.mxu0 0.0
        %1612 = vmatpush.msra.mxu0 0.0
        %1613 = vmatpush.msra.mxu0 0.0
        %1614 = vmatpush.msra.mxu0 0.0
        %1615 = vmatpush.msra.mxu0 0.0
        %1616 = vmatpush.msra.mxu0 0.0
        %1617 = vmatpush.msra.mxu0 0.0
        %1618 = vmatpush.msra.mxu0 0.0
        %1619 = vmatpush.msra.mxu0 %v1077
        %1620 = vmatmul.f32.gmra.mxu0 %v1602
        %v1621 = vpop.f32.mrf.mxu0
        %v1622 = vadd.f32 0.0, %v1621
        %1623 = vdwg.mxu0
        %v1625 = vsel %vm1316, %v1478, 0
        %1627 = vmatpush.msra.mxu0 0.0
        %1628 = vmatpush.msra.mxu0 0.0
        %1629 = vmatpush.msra.mxu0 0.0
        %1630 = vmatpush.msra.mxu0 0.0
        %1631 = vmatpush.msra.mxu0 0.0
        %1632 = vmatpush.msra.mxu0 0.0
        %1633 = vmatpush.msra.mxu0 0.0
        %1634 = vmatpush.msra.mxu0 0.0
        %1635 = vmatpush.msra.mxu0 0.0
        %1636 = vmatpush.msra.mxu0 0.0
        %1637 = vmatpush.msra.mxu0 0.0
        %1638 = vmatpush.msra.mxu0 0.0
        %1639 = vmatpush.msra.mxu0 0.0
        %1640 = vmatpush.msra.mxu0 0.0
        %1641 = vmatpush.msra.mxu0 0.0
        %1642 = vmatpush.msra.mxu0 %v1079
        %1643 = vmatmul.f32.gmra.mxu0 %v1625
        %v1644 = vpop.f32.mrf.mxu0
        %v1645 = vadd.f32 0.0, %v1644
        %1646 = vdwg.mxu0
        %v1648 = vsel %vm1316, %v1493, 0
        %1650 = vmatpush.msra.mxu0 0.0
        %1651 = vmatpush.msra.mxu0 0.0
        %1652 = vmatpush.msra.mxu0 0.0
        %1653 = vmatpush.msra.mxu0 0.0
        %1654 = vmatpush.msra.mxu0 0.0
        %1655 = vmatpush.msra.mxu0 0.0
        %1656 = vmatpush.msra.mxu0 0.0
        %1657 = vmatpush.msra.mxu0 0.0
        %1658 = vmatpush.msra.mxu0 0.0
        %1659 = vmatpush.msra.mxu0 0.0
        %1660 = vmatpush.msra.mxu0 0.0
        %1661 = vmatpush.msra.mxu0 0.0
        %1662 = vmatpush.msra.mxu0 0.0
        %1663 = vmatpush.msra.mxu0 0.0
        %1664 = vmatpush.msra.mxu0 0.0
        %1665 = vmatpush.msra.mxu0 %v1081
        %1666 = vmatmul.f32.gmra.mxu0 %v1648
        %v1667 = vpop.f32.mrf.mxu0
        %v1668 = vadd.f32 0.0, %v1667
        %1669 = vdwg.mxu0
        %v1671 = vsel %vm1316, %v1508, 0
        %1673 = vmatpush.msra.mxu0 0.0
        %1674 = vmatpush.msra.mxu0 0.0
        %1675 = vmatpush.msra.mxu0 0.0
        %1676 = vmatpush.msra.mxu0 0.0
        %1677 = vmatpush.msra.mxu0 0.0
        %1678 = vmatpush.msra.mxu0 0.0
        %1679 = vmatpush.msra.mxu0 0.0
        %1680 = vmatpush.msra.mxu0 0.0
        %1681 = vmatpush.msra.mxu0 0.0
        %1682 = vmatpush.msra.mxu0 0.0
        %1683 = vmatpush.msra.mxu0 0.0
        %1684 = vmatpush.msra.mxu0 0.0
        %1685 = vmatpush.msra.mxu0 0.0
        %1686 = vmatpush.msra.mxu0 0.0
        %1687 = vmatpush.msra.mxu0 0.0
        %1688 = vmatpush.msra.mxu0 %v1083
        %1689 = vmatmul.f32.gmra.mxu0 %v1671
        %v1690 = vpop.f32.mrf.mxu0
        %v1691 = vadd.f32 0.0, %v1690
        %1692 = vdwg.mxu0
        %v1693 = vrot.slane %v1576, 4
        %v1694 = vsel %vm412, %v1693, %v1530
        %v1695 = vrot.slane %v1530, 4
        %v1696 = vsel %vm412, %v1576, %v1695
        %v1698 = vunpack.c.l.s4 1983009808
        %v1699 = vunpack.c.0.s8 %v1698
        %v1700 = vperm.slane %v1694, %v1699
        %v1702 = vunpack.c.l.s4 1983009808
        %v1703 = vunpack.c.0.s8 %v1702
        %v1704 = vperm.slane %v1696, %v1703
        %v1705 = vrot.slane %v1599, 4
        %v1706 = vsel %vm412, %v1705, %v1553
        %v1707 = vrot.slane %v1553, 4
        %v1708 = vsel %vm412, %v1599, %v1707
        %v1710 = vunpack.c.l.s4 1983009808
        %v1711 = vunpack.c.0.s8 %v1710
        %v1712 = vperm.slane %v1706, %v1711
        %v1714 = vunpack.c.l.s4 1983009808
        %v1715 = vunpack.c.0.s8 %v1714
        %v1716 = vperm.slane %v1708, %v1715
        %v1717 = vrot.slane %v1668, 4
        %v1718 = vsel %vm412, %v1717, %v1622
        %v1719 = vrot.slane %v1622, 4
        %v1720 = vsel %vm412, %v1668, %v1719
        %v1722 = vunpack.c.l.s4 1983009808
        %v1723 = vunpack.c.0.s8 %v1722
        %v1724 = vperm.slane %v1718, %v1723
        %v1726 = vunpack.c.l.s4 1983009808
        %v1727 = vunpack.c.0.s8 %v1726
        %v1728 = vperm.slane %v1720, %v1727
        %v1729 = vrot.slane %v1691, 4
        %v1730 = vsel %vm412, %v1729, %v1645
        %v1731 = vrot.slane %v1645, 4
        %v1732 = vsel %vm412, %v1691, %v1731
        %v1734 = vunpack.c.l.s4 1983009808
        %v1735 = vunpack.c.0.s8 %v1734
        %v1736 = vperm.slane %v1730, %v1735
        %v1738 = vunpack.c.l.s4 1983009808
        %v1739 = vunpack.c.0.s8 %v1738
        %v1740 = vperm.slane %v1732, %v1739
        %v1741 = vrot.slane %v1712, 4
        %v1742 = vsel %vm412, %v1741, %v1700
        %v1743 = vrot.slane %v1700, 4
        %v1744 = vsel %vm412, %v1712, %v1743
        %v1746 = vunpack.c.l.s4 1934713408
        %v1747 = vunpack.c.0.s8 %v1746
        %v1748 = vperm.slane %v1742, %v1747
        %v1750 = vunpack.c.l.s4 1934713408
        %v1751 = vunpack.c.0.s8 %v1750
        %v1752 = vperm.slane %v1744, %v1751
        %v1753 = vrot.slane %v1716, 4
        %v1754 = vsel %vm412, %v1753, %v1704
        %v1755 = vrot.slane %v1704, 4
        %v1756 = vsel %vm412, %v1716, %v1755
        %v1758 = vunpack.c.l.s4 1934713408
        %v1759 = vunpack.c.0.s8 %v1758
        %v1760 = vperm.slane %v1754, %v1759
        %v1762 = vunpack.c.l.s4 1934713408
        %v1763 = vunpack.c.0.s8 %v1762
        %v1764 = vperm.slane %v1756, %v1763
        %v1765 = vrot.slane %v1736, 4
        %v1766 = vsel %vm412, %v1765, %v1724
        %v1767 = vrot.slane %v1724, 4
        %v1768 = vsel %vm412, %v1736, %v1767
        %v1770 = vunpack.c.l.s4 1934713408
        %v1771 = vunpack.c.0.s8 %v1770
        %v1772 = vperm.slane %v1766, %v1771
        %v1774 = vunpack.c.l.s4 1934713408
        %v1775 = vunpack.c.0.s8 %v1774
        %v1776 = vperm.slane %v1768, %v1775
        %v1777 = vrot.slane %v1740, 4
        %v1778 = vsel %vm412, %v1777, %v1728
        %v1779 = vrot.slane %v1728, 4
        %v1780 = vsel %vm412, %v1740, %v1779
        %v1782 = vunpack.c.l.s4 1934713408
        %v1783 = vunpack.c.0.s8 %v1782
        %v1784 = vperm.slane %v1778, %v1783
        %v1786 = vunpack.c.l.s4 1934713408
        %v1787 = vunpack.c.0.s8 %v1786
        %v1788 = vperm.slane %v1780, %v1787
        %v1789 = vrot.slane %v1772, 4
        %v1790 = vsel %vm412, %v1789, %v1748
        %v1791 = vrot.slane %v1748, 4
        %v1792 = vsel %vm412, %v1772, %v1791
        %v1793 = vrot.slane %v1776, 4
        %v1794 = vsel %vm412, %v1793, %v1752
        %v1795 = vrot.slane %v1752, 4
        %v1796 = vsel %vm412, %v1776, %v1795
        %v1797 = vrot.slane %v1784, 4
        %v1798 = vsel %vm412, %v1797, %v1760
        %v1799 = vrot.slane %v1760, 4
        %v1800 = vsel %vm412, %v1784, %v1799
        %v1801 = vrot.slane %v1788, 4
        %v1802 = vsel %vm412, %v1801, %v1764
        %v1803 = vrot.slane %v1764, 4
        %v1804 = vsel %vm412, %v1788, %v1803
        %v1805 = vrot.slane %v1794, 4
        %v1806 = vsel %vm412, %v1805, %v1790
        %v1807 = vrot.slane %v1790, 4
        %v1808 = vsel %vm412, %v1794, %v1807
        %v1810 = vunpack.c.l.s4 1983009808
        %v1811 = vunpack.c.0.s8 %v1810
        %v1812 = vperm.slane %v1806, %v1811
        %v1814 = vunpack.c.l.s4 1983009808
        %v1815 = vunpack.c.0.s8 %v1814
        %v1816 = vperm.slane %v1808, %v1815
        %v1817 = vrot.slane %v1796, 4
        %v1818 = vsel %vm412, %v1817, %v1792
        %v1819 = vrot.slane %v1792, 4
        %v1820 = vsel %vm412, %v1796, %v1819
        %v1822 = vunpack.c.l.s4 1983009808
        %v1823 = vunpack.c.0.s8 %v1822
        %v1824 = vperm.slane %v1818, %v1823
        %v1826 = vunpack.c.l.s4 1983009808
        %v1827 = vunpack.c.0.s8 %v1826
        %v1828 = vperm.slane %v1820, %v1827
        %v1829 = vrot.slane %v1802, 4
        %v1830 = vsel %vm412, %v1829, %v1798
        %v1831 = vrot.slane %v1798, 4
        %v1832 = vsel %vm412, %v1802, %v1831
        %v1834 = vunpack.c.l.s4 1983009808
        %v1835 = vunpack.c.0.s8 %v1834
        %v1836 = vperm.slane %v1830, %v1835
        %v1838 = vunpack.c.l.s4 1983009808
        %v1839 = vunpack.c.0.s8 %v1838
        %v1840 = vperm.slane %v1832, %v1839
        %v1841 = vrot.slane %v1804, 4
        %v1842 = vsel %vm412, %v1841, %v1800
        %v1843 = vrot.slane %v1800, 4
        %v1844 = vsel %vm412, %v1804, %v1843
        %v1846 = vunpack.c.l.s4 1983009808
        %v1847 = vunpack.c.0.s8 %v1846
        %v1848 = vperm.slane %v1842, %v1847
        %v1850 = vunpack.c.l.s4 1983009808
        %v1851 = vunpack.c.0.s8 %v1850
        %v1852 = vperm.slane %v1844, %v1851
        %v1853 = vrot.slane %v1824, 4
        %v1854 = vsel %vm412, %v1853, %v1812
        %v1855 = vrot.slane %v1812, 4
        %v1856 = vsel %vm412, %v1824, %v1855
        %v1858 = vunpack.c.l.s4 1934713408
        %v1859 = vunpack.c.0.s8 %v1858
        %v1860 = vperm.slane %v1854, %v1859
        %v1862 = vunpack.c.l.s4 1934713408
        %v1863 = vunpack.c.0.s8 %v1862
        %v1864 = vperm.slane %v1856, %v1863
        %v1865 = vrot.slane %v1828, 4
        %v1866 = vsel %vm412, %v1865, %v1816
        %v1867 = vrot.slane %v1816, 4
        %v1868 = vsel %vm412, %v1828, %v1867
        %v1870 = vunpack.c.l.s4 1934713408
        %v1871 = vunpack.c.0.s8 %v1870
        %v1872 = vperm.slane %v1866, %v1871
        %v1874 = vunpack.c.l.s4 1934713408
        %v1875 = vunpack.c.0.s8 %v1874
        %v1876 = vperm.slane %v1868, %v1875
        %v1877 = vrot.slane %v1848, 4
        %v1878 = vsel %vm412, %v1877, %v1836
        %v1879 = vrot.slane %v1836, 4
        %v1880 = vsel %vm412, %v1848, %v1879
        %v1882 = vunpack.c.l.s4 1934713408
        %v1883 = vunpack.c.0.s8 %v1882
        %v1884 = vperm.slane %v1878, %v1883
        %v1886 = vunpack.c.l.s4 1934713408
        %v1887 = vunpack.c.0.s8 %v1886
        %v1888 = vperm.slane %v1880, %v1887
        %v1889 = vrot.slane %v1852, 4
        %v1890 = vsel %vm412, %v1889, %v1840
        %v1891 = vrot.slane %v1840, 4
        %v1892 = vsel %vm412, %v1852, %v1891
        %v1894 = vunpack.c.l.s4 1934713408
        %v1895 = vunpack.c.0.s8 %v1894
        %v1896 = vperm.slane %v1890, %v1895
        %v1898 = vunpack.c.l.s4 1934713408
        %v1899 = vunpack.c.0.s8 %v1898
        %v1900 = vperm.slane %v1892, %v1899
        %v1901 = vrot.slane %v1884, 4
        %v1902 = vsel %vm412, %v1901, %v1860
        %v1903 = vrot.slane %v1860, 4
        %v1904 = vsel %vm412, %v1884, %v1903
        %v1905 = vrot.slane %v1888, 4
        %v1906 = vsel %vm412, %v1905, %v1864
        %v1907 = vrot.slane %v1864, 4
        %v1908 = vsel %vm412, %v1888, %v1907
        %v1909 = vrot.slane %v1896, 4
        %v1910 = vsel %vm412, %v1909, %v1872
        %v1911 = vrot.slane %v1872, 4
        %v1912 = vsel %vm412, %v1896, %v1911
        %v1913 = vrot.slane %v1900, 4
        %v1914 = vsel %vm412, %v1913, %v1876
        %v1915 = vrot.slane %v1876, 4
        %v1916 = vsel %vm412, %v1900, %v1915
        %1918 = vrot.lane.b32.xlu0 %v1904, 4
        %v1919 = vpop.permute.xlu0 %1918
        %1922 = vrot.lane.b32.xlu0 %v1906, 8
        %v1923 = vpop.permute.xlu0 %1922
        %1926 = vrot.lane.b32.xlu0 %v1908, 12
        %v1927 = vpop.permute.xlu0 %1926
        %1930 = vrot.lane.b32.xlu0 %v1910, 16
        %v1931 = vpop.permute.xlu0 %1930
        %1934 = vrot.lane.b32.xlu0 %v1912, 20
        %v1935 = vpop.permute.xlu0 %1934
        %1938 = vrot.lane.b32.xlu0 %v1914, 24
        %v1939 = vpop.permute.xlu0 %1938
        %1942 = vrot.lane.b32.xlu0 %v1916, 28
        %v1943 = vpop.permute.xlu0 %1942
        %v1945 = vsel %vm1084, %v1902, %v1919
        %v1946 = vsel %vm1316, %v1945, %v1923
        %vm1947 = vcmask 97280
        %v1948 = vsel %vm1947, %v1946, %v1927
        %vm1949 = vcmask 130048
        %v1950 = vsel %vm1949, %v1948, %v1931
        %vm1951 = vcmask 162816
        %v1952 = vsel %vm1951, %v1950, %v1935
        %vm1953 = vcmask 195584
        %v1954 = vsel %vm1953, %v1952, %v1939
        %vm1955 = vcmask 228352
        %v1956 = vsel %vm1955, %v1954, %v1943
        %v1957 = vld [vmem:[#allocation5] sm:$0xff]
        %v1958 = vld [vmem:[#allocation5 + $0x8] sm:$0xff]
        %v1959 = vld [vmem:[#allocation5 + $0x10] sm:$0xff]
        %v1960 = vld [vmem:[#allocation5 + $0x18] sm:$0xff]
        %v1961 = vld [vmem:[%s5] sm:$0x1]
        %v1963 = vperm.slane %v1961, 0
        %v1966 = vsel %vm317, %v1956, 0
        %1968 = vmatpush.msra.mxu0 0.0
        %1969 = vmatpush.msra.mxu0 0.0
        %1970 = vmatpush.msra.mxu0 0.0
        %1971 = vmatpush.msra.mxu0 0.0
        %1972 = vmatpush.msra.mxu0 0.0
        %1973 = vmatpush.msra.mxu0 0.0
        %1974 = vmatpush.msra.mxu0 0.0
        %1975 = vmatpush.msra.mxu0 0.0
        %1976 = vmatpush.msra.mxu0 0.0
        %1977 = vmatpush.msra.mxu0 0.0
        %1978 = vmatpush.msra.mxu0 0.0
        %1979 = vmatpush.msra.mxu0 0.0
        %1980 = vmatpush.msra.mxu0 %v1960
        %1981 = vmatpush.msra.mxu0 %v1959
        %1982 = vmatpush.msra.mxu0 %v1958
        %1983 = vmatpush.msra.mxu0 %v1957
        %1984 = vmatmul.f32.gmra.mxu0 %v1966
        %v1985 = vpop.f32.mrf.mxu0
        %v1986 = vadd.f32 %v1963, %v1985
        %1987 = vdwg.mxu0
        %1988 = vst.msk [vmem:[%s300] sm:$0xff] %vm317, %v1986
        %s1989 = sand.u32 %s171, 1
        %s1990 = scalar_lea.sflag [#allocation4], %s1989
        %s1991 = sand.u32 %s171, 1
        %s1992 = smul.addr %s1991, 8
        %s1993 = scalar_lea.vmem [#allocation7], %s1992
        // Predicated region
        $region53: #{tpu_custom_call.1} parent=43 // pred_check
          %p1994 = pneg %p181
        $region54: #{tpu_custom_call.1} parent=43 // pred_check_branch
          %1996 = sbr.rel (%p1994) target = $region56
        $region55: #{tpu_custom_call.1} parent=43 // pred_region
          %1998 = vsyncadd %s1990, 0
          %s1999 = smul.addr %s22, 8
          %s2000 = scalar_lea.hbm %s6, %s1999
          %s2002 = sshll.u32 %s1993, 4
          %s2003 = int_to_ptr.vmem [resolvable:$true] %s2002
          %s2004 = sshll.u32 %s2000, 4
          %s2005 = int_to_ptr.hbm [resolvable:$true] %s2004
          %2007 = dma.vmem_to_hbm [thread:$0]  %s2003, 128, %s2005, %s1990
        $region56: #{tpu_custom_call.1} parent=43 // pred_fallthru
          _
      $region44: #{tpu_custom_call.1} parent=5 // pred_fallthru
        _
      %p2008 = scmp.le.s32.totalorder 2, %s17
      // Predicated region
      $region57: #{tpu_custom_call.1} parent=5 // pred_check
        %p2009 = pneg %p2008
      $region58: #{tpu_custom_call.1} parent=5 // pred_check_branch
        %2011 = sbr.rel (%p2009) target = $region60
      $region59: #{tpu_custom_call.1} parent=5 // pred_region
        %s2012 = ssub.s32 %s17, 2
        // Predicated region
        $region61: #{tpu_custom_call.1} parent=59 // pred_check
          %p2013 = pneg %p187
        $region62: #{tpu_custom_call.1} parent=59 // pred_check_branch
          %2015 = sbr.rel (%p2013) target = $region64
        $region63: #{tpu_custom_call.1} parent=59 // pred_region
          %s2016 = sand.u32 %s172, 1
          %s2017 = scalar_lea.sflag [#allocation4], %s2016
          %s2018 = sand.u32 %s172, 1
          %s2019 = smul.addr %s2018, 8
          %s2020 = scalar_lea.vmem [#allocation7], %s2019
          %2022 = dma.done %s2017, 128
        $region64: #{tpu_custom_call.1} parent=59 // pred_fallthru
          _
      $region60: #{tpu_custom_call.1} parent=5 // pred_fallthru
        _
    $region6: #{tpu_custom_call.1} parent=1 // loop_footer
      %s21 = sadd.s32 1, %s17
    $region7: #{tpu_custom_call.1} parent=1 // loop_footer_branch
      %16 = sbr.rel target = $region3
    $region8: #{tpu_custom_call.1} parent=1 // loop_exit
      _
    %2023 = vsyncpa [#allocation3], 1
    %s2024 = scalar_lea.sflag [#allocation3], 1
    %2025 = vsyncpa %s2024, 1
    %2026 = vsyncpa [#allocation6], 1
    %2027 = vsyncpa [#allocation4], 1
    %s2028 = scalar_lea.sflag [#allocation4], 1
    %2029 = vsyncpa %s2028, 1

</llo_original>
